<compile_context>
chip_gen: v6e
topology: v6e:2x2x1
jax: 0.10.0
libtpu: 0.0.40
codegen_flags: <defaults>
</compile_context>

<pallas_src>
import jax
import jax.numpy as jnp
from jax.experimental import pallas as pl
from jax.experimental.pallas import tpu as pltpu

_NEG_BIG = -1e30  # "minus infinity" bias for padded softmax lanes (must stay f32)


def _round_up(n, m):
    return ((n + m - 1) // m) * m


# ----------------------------------------------------------------------------
# Kernel: one batch tile of
#   x -> h=relu(fc1 x) -> [mu|log_var]=fc2|fc3 h -> z=mu+eps*exp(lv/2)
#     -> h2=relu(fc4 z) -> x_reconst=softmax(fc5 h2, dim=1)
# ----------------------------------------------------------------------------
def dcv_kernel(x_ref, eps_ref,
               w1_ref, b1_ref,
               w23_ref, b23_ref,
               w4_ref, b4_ref,
               w5_ref, b5_ref,
               xr_ref, mulv_ref):
    cdt = w1_ref.dtype              # MXU compute dtype (bfloat16)
    f32 = jnp.float32
    zp = eps_ref.shape[-1]          # lane-padded z dim

    # encode: h = relu(fc1(x))   (x already bf16 -> no in-kernel cast / VPU work)
    h = jnp.dot(x_ref[...], w1_ref[...], preferred_element_type=f32) + b1_ref[...]
    h = jnp.maximum(h, 0.0)

    # fused mu / log_var head: single [tb, 2*zp] MXU pass, stored lane-dense
    mulv = jnp.dot(h.astype(cdt), w23_ref[...], preferred_element_type=f32) + b23_ref[...]
    mulv_ref[...] = mulv            # store early: lane-dense vst, short live range
    mu = mulv[:, :zp]
    log_var = mulv[:, zp:]

    # reparameterize: z = mu + eps * exp(log_var / 2) (padded z lanes stay exactly 0)
    z = mu + eps_ref[...] * jnp.exp(log_var * 0.5)

    # decode
    h2 = jnp.dot(z.astype(cdt), w4_ref[...], preferred_element_type=f32) + b4_ref[...]
    h2 = jnp.maximum(h2, 0.0)
    logits = jnp.dot(h2.astype(cdt), w5_ref[...], preferred_element_type=f32) + b5_ref[...]

    m = jnp.max(logits, axis=-1, keepdims=True)
    e = jnp.exp(logits - m)         # padded lanes: exp(-1e30 - m) == 0 exactly
    s = jnp.sum(e, axis=-1, keepdims=True)
    # exact reciprocal so softmax rows sum to 1 (approx=True is only ~bf16 accurate)
    xr_ref[...] = e * pl.reciprocal(s, approx=False)


# ----------------------------------------------------------------------------
# One-time parameter preparation (fuse fc2|fc3, lane-pad, bf16 cast).
# ----------------------------------------------------------------------------
def dcv_prepare_params(params, compute_dtype=jnp.bfloat16):
    """Pad / fuse / cast the DCV parameters once; reuse the result across calls.

    params = (w1T, b1, w2T, b2, w3T, b3, w4T, b4, w5T, b5), each wNT stored as
    [in_dim, out_dim] (nn.Linear weight transposed), bN of shape [out] or [1, out].
    """
    w1t, b1, w2t, b2, w3t, b3, w4t, b4, w5t, b5 = params
    f32 = jnp.float32
    count_size, h_dim = w1t.shape
    z_dim = w2t.shape[1]
    o_dim = w5t.shape[1]
    h_pad = _round_up(h_dim, 128)
    z_pad = _round_up(z_dim, 128)
    o_pad = _round_up(o_dim, 128)

    def row(b):
        return jnp.asarray(b, f32).reshape(1, -1)

    def pad_cols(a, tgt, fill=0.0):
        a = jnp.asarray(a, f32)
        return jnp.pad(a, ((0, 0), (0, tgt - a.shape[1])), constant_values=fill)

    def pad_rows(a, tgt):
        a = jnp.asarray(a, f32)
        return jnp.pad(a, ((0, tgt - a.shape[0]), (0, 0)))

    # fc1 -> [count_size, h_pad]; padded h lanes: zero weight & bias -> relu -> 0
    w1 = pad_cols(w1t, h_pad).astype(compute_dtype)
    b1p = pad_cols(row(b1), h_pad)

    # fused fc2|fc3 head -> [h_pad, 2*z_pad]; zero rows for padded h lanes
    w23 = jnp.concatenate([pad_cols(w2t, z_pad), pad_cols(w3t, z_pad)], axis=1)
    w23 = pad_rows(w23, h_pad).astype(compute_dtype)
    b23 = jnp.concatenate([pad_cols(row(b2), z_pad), pad_cols(row(b3), z_pad)], axis=1)

    # fc4 -> [z_pad, h_pad]; padded z rows are zero (padded z lanes are exactly 0 too)
    w4 = pad_cols(pad_rows(w4t, z_pad), h_pad).astype(compute_dtype)
    b4p = pad_cols(row(b4), h_pad)

    # fc5 -> [h_pad, o_pad]; padded output lanes: zero weights + f32 -1e30 bias
    # => exp(logit - max) == 0 exactly, so they never perturb the softmax.
    w5 = pad_cols(pad_rows(w5t, h_pad), o_pad).astype(compute_dtype)
    b5p = pad_cols(row(b5), o_pad, fill=_NEG_BIG)

    return dict(w1=w1, b1=b1p, w23=w23, b23=b23, w4=w4, b4=b4p, w5=w5, b5=b5p,
                count_size=count_size, h_dim=h_dim, z_dim=z_dim, o_dim=o_dim,
                h_pad=h_pad, z_pad=z_pad, o_pad=o_pad,
                compute_dtype=jnp.dtype(compute_dtype))


def _pick_tb(B):
    """Batch tile: multiple of 8, <= 256, and >= 2 grid steps whenever B >= 16.

    >= 2 steps keeps both v7x TensorCores busy (dimension_semantics=("parallel",));
    capping at 256 fills the 256-row bf16 MXU on v6e/v7x.
    """
    if B <= 8:
        return 8
    half = max(8, (B // 2 // 8) * 8)   # largest multiple of 8 <= B/2
    return min(256, half)


# ----------------------------------------------------------------------------
# pallas_call builder + wrapper
# ----------------------------------------------------------------------------
def _call_pallas(x_c, eps_p, weights, dims, tb, weight_buffers, x_buffers):
    w1, b1, w23, b23, w4, b4, w5, b5 = weights
    B_pad, count_size, z_pad, o_pad = dims

    def const_spec(shape):
        # constant index_map -> block never changes; single-buffer it to save VMEM
        if weight_buffers is None:
            return pl.BlockSpec(shape, lambda i: (0, 0))
        return pl.BlockSpec(shape, lambda i: (0, 0),
                            pipeline_mode=pl.Buffered(weight_buffers))

    def batch_spec(shape, buffers=2):
        if buffers == 2:
            return pl.BlockSpec(shape, lambda i: (i, 0))
        return pl.BlockSpec(shape, lambda i: (i, 0), pipeline_mode=pl.Buffered(buffers))

    in_arrays = (x_c, eps_p, w1, b1, w23, b23, w4, b4, w5, b5)
    in_specs = [batch_spec((tb, count_size), x_buffers),
                batch_spec((tb, z_pad))]
    in_specs += [const_spec(a.shape) for a in (w1, b1, w23, b23, w4, b4, w5, b5)]

    out_shape = (jax.ShapeDtypeStruct((B_pad, o_pad), jnp.float32),       # x_reconst
                 jax.ShapeDtypeStruct((B_pad, 2 * z_pad), jnp.float32))   # [mu|log_var]
    out_specs = [pl.BlockSpec((tb, o_pad), lambda i: (i, 0)),
                 pl.BlockSpec((tb, 2 * z_pad), lambda i: (i, 0))]

    # Accurate scoped-VMEM budget: single-buffered weights + pipelined activation
    # tiles + fixed headroom for in-kernel intermediates; capped at 64 MiB (v7x).
    w_mult = 1 if weight_buffers == 1 else 2
    weight_bytes = w_mult * sum(int(a.size) * a.dtype.itemsize
                                for a in (w1, b1, w23, b23, w4, b4, w5, b5))
    io_bytes = (max(x_buffers, 2) * tb * count_size * x_c.dtype.itemsize
                + 2 * tb * z_pad * 4            # eps tiles
                + 2 * tb * o_pad * 4            # x_reconst tiles
                + 2 * tb * 2 * z_pad * 4)       # fused mu|log_var tiles
    vmem_limit = min(64 * 1024 * 1024,
                     int(1.3 * (weight_bytes + io_bytes)) + (4 << 20))

    h_pad = w1.shape[1]
    flops = 2 * B_pad * (count_size * h_pad + h_pad * 2 * z_pad
                         + z_pad * h_pad + h_pad * o_pad)
    bytes_accessed = (sum(int(a.size) * a.dtype.itemsize for a in in_arrays)
                      + 4 * B_pad * (o_pad + 2 * z_pad))

    return pl.pallas_call(
        dcv_kernel,
        out_shape=out_shape,
        grid_spec=pltpu.PrefetchScalarGridSpec(
            num_scalar_prefetch=0,
            grid=(B_pad // tb,),
            in_specs=in_specs,
            out_specs=out_specs),
        compiler_params=pltpu.CompilerParams(
            dimension_semantics=("parallel",),   # batch axis -> both v7x TensorCores
            vmem_limit_bytes=vmem_limit),
        cost_estimate=pl.CostEstimate(
            flops=flops,
            transcendentals=B_pad * (z_pad + o_pad + 1),
            bytes_accessed=bytes_accessed),
    )(*in_arrays)


_SINGLE_BUFFER_WEIGHTS_OK = True   # flipped to False if this build rejects pl.Buffered(1)


def dcv_forward(x, eps, prepared, *, tb=None, x_buffers=2):
    """DCV forward.  x: [B, count_size]; eps: [B, z_dim] reparameterization noise.

    `prepared` comes from dcv_prepare_params (run once, reuse across calls).
    Returns (x_reconst [B, o_dim], mu [B, z_dim], log_var [B, z_dim]).
    Set x_buffers=3 on v5e to deepen the x input pipeline.
    """
    global _SINGLE_BUFFER_WEIGHTS_OK
    p = prepared
    B = x.shape[0]
    count_size, z_dim, o_dim = p["count_size"], p["z_dim"], p["o_dim"]
    z_pad, o_pad = p["z_pad"], p["o_pad"]
    if x.shape[1] != count_size:
        raise ValueError(f"x has {x.shape[1]} features, expected {count_size}")
    if eps.shape != (B, z_dim):
        raise ValueError(f"eps must be [{B}, {z_dim}], got {eps.shape}")

    if tb is None:
        tb = _pick_tb(B)
    if tb % 8 != 0:
        raise ValueError(f"tb={tb} must be a multiple of 8 (f32/bf16 sublane packing)")
    B_pad = _round_up(B, tb)

    # bf16 x halves the dominant HBM->VMEM stream; eps stays f32 (tiny).
    x_c = jnp.asarray(x, p["compute_dtype"])
    if B_pad != B:
        x_c = jnp.pad(x_c, ((0, B_pad - B), (0, 0)))
    eps_p = jnp.pad(jnp.asarray(eps, jnp.float32),
                    ((0, B_pad - B), (0, z_pad - z_dim)))

    weights = (p["w1"], p["b1"], p["w23"], p["b23"], p["w4"], p["b4"], p["w5"], p["b5"])
    dims = (B_pad, count_size, z_pad, o_pad)

    xr_p = mulv_p = None
    if _SINGLE_BUFFER_WEIGHTS_OK:
        try:
            xr_p, mulv_p = _call_pallas(x_c, eps_p, weights, dims, tb, 1, x_buffers)
        except Exception:
            _SINGLE_BUFFER_WEIGHTS_OK = False   # pl.Buffered(1) unsupported here
    if xr_p is None:
        xr_p, mulv_p = _call_pallas(x_c, eps_p, weights, dims, tb, None, x_buffers)

    x_reconst = xr_p[:B, :o_dim]
    mu = mulv_p[:B, :z_dim]
    log_var = mulv_p[:B, z_pad:z_pad + z_dim]
    return x_reconst, mu, log_var


# ----------------------------------------------------------------------------
# References and test
# ----------------------------------------------------------------------------
def init_linear(key, in_dim, out_dim):
    """PyTorch nn.Linear default init U(-1/sqrt(in), 1/sqrt(in)); returns (W^T, b[1,out])."""
    kw, kb = jax.random.split(key)
    bound = 1.0 / jnp.sqrt(jnp.float32(in_dim))
    wt = jax.random.uniform(kw, (in_dim, out_dim), jnp.float32, -bound, bound)
    b = jax.random.uniform(kb, (1, out_dim), jnp.float32, -bound, bound)
    return wt, b


def reference_forward_f32(x, eps, params):
    """Pure-f32 JAX reference matching the PyTorch module semantics."""
    w1t, b1, w2t, b2, w3t, b3, w4t, b4, w5t, b5 = params
    h = jax.nn.relu(x @ w1t + b1)
    mu = h @ w2t + b2
    lv = h @ w3t + b3
    z = mu + eps * jnp.exp(lv / 2)
    h2 = jax.nn.relu(z @ w4t + b4)
    xr = jax.nn.softmax(h2 @ w5t + b5, axis=1)
    return xr, mu, lv


def reference_forward_matched(x, eps, prepared):
    """Reference with the same bf16 MXU operands / f32 accumulation as the kernel."""
    p = prepared
    cdt = p["compute_dtype"]
    z_pad, z_dim, o_dim = p["z_pad"], p["z_dim"], p["o_dim"]
    eps_p = jnp.pad(jnp.asarray(eps, jnp.float32), ((0, 0), (0, z_pad - z_dim)))
    dot = lambda a, b: jnp.dot(a.astype(cdt), b, preferred_element_type=jnp.float32)
    h = jnp.maximum(dot(x, p["w1"]) + p["b1"], 0.0)
    mulv = dot(h, p["w23"]) + p["b23"]
    mu, lv = mulv[:, :z_pad], mulv[:, z_pad:]
    z = mu + eps_p * jnp.exp(lv * 0.5)
    h2 = jnp.maximum(dot(z, p["w4"]) + p["b4"], 0.0)
    logits = dot(h2, p["w5"]) + p["b5"]
    xr = jax.nn.softmax(logits, axis=1)
    return xr[:, :o_dim], mu[:, :z_dim], lv[:, :z_dim]


if __name__ == "__main__":
    # Small shapes consistent with DCV(count_size, h_dim, z_dim, o_dim); h_dim=120
    # deliberately exercises the h-lane padding path (the real model uses 400).
    B, count_size, h_dim, z_dim, o_dim = 64, 256, 120, 20, 96

    key = jax.random.PRNGKey(0)
    k_x, k_eps, k1, k2, k3, k4, k5 = jax.random.split(key, 7)

    x = jax.random.uniform(k_x, (B, count_size), jnp.float32)
    eps = jax.random.normal(k_eps, (B, z_dim), jnp.float32)  # torch.randn_like equivalent

    w1t, b1 = init_linear(k1, count_size, h_dim)
    w2t, b2 = init_linear(k2, h_dim, z_dim)
    w3t, b3 = init_linear(k3, h_dim, z_dim)
    w4t, b4 = init_linear(k4, z_dim, h_dim)
    w5t, b5 = init_linear(k5, h_dim, o_dim)
    params = (w1t, b1, w2t, b2, w3t, b3, w4t, b4, w5t, b5)

    prepared = dcv_prepare_params(params)            # one-time pad/fuse/bf16 cast
    # _pick_tb(64) -> tb=32, grid=(2,): >=2 steps for v7x megacore, full sublane fill.
    x_reconst, mu, log_var = dcv_forward(x, eps, prepared)
    jax.block_until_ready((x_reconst, mu, log_var))

    # Tight check vs. a reference with identical bf16-MXU / f32-accumulation numerics.
    xr_m, mu_m, lv_m = reference_forward_matched(x, eps, prepared)
    assert jnp.allclose(mu, mu_m, atol=1e-4, rtol=1e-4)
    assert jnp.allclose(log_var, lv_m, atol=1e-4, rtol=1e-4)
    assert jnp.allclose(x_reconst, xr_m, atol=2e-3)

    # Loose sanity check vs. the pure-f32 module semantics (bf16 rounding of x / weights).
    xr_f, mu_f, lv_f = reference_forward_f32(x, eps, params)
    assert jnp.allclose(mu, mu_f, atol=5e-2)
    assert jnp.allclose(log_var, lv_f, atol=5e-2)
    assert jnp.allclose(x_reconst, xr_f, atol=2e-2)

    # Exact normalization: softmax rows sum to 1 (padded lanes contribute exactly 0).
    assert jnp.allclose(jnp.sum(x_reconst, axis=1), 1.0, atol=1e-3)

    print("KERNEL_OK")
</pallas_src>

<mosaic_0001>
module attributes {stable_mosaic.version = 11 : i64} {
  func.func @dcv_kernel(%arg0: i32, %arg1: memref<32x256xbf16, #tpu.memory_space<vmem>>, %arg2: memref<32x128xf32, #tpu.memory_space<vmem>>, %arg3: memref<256x128xbf16, #tpu.memory_space<vmem>>, %arg4: memref<1x128xf32, #tpu.memory_space<vmem>>, %arg5: memref<128x256xbf16, #tpu.memory_space<vmem>>, %arg6: memref<1x256xf32, #tpu.memory_space<vmem>>, %arg7: memref<128x128xbf16, #tpu.memory_space<vmem>>, %arg8: memref<1x128xf32, #tpu.memory_space<vmem>>, %arg9: memref<128x128xbf16, #tpu.memory_space<vmem>>, %arg10: memref<1x128xf32, #tpu.memory_space<vmem>>, %arg11: memref<32x128xf32, #tpu.memory_space<vmem>>, %arg12: memref<32x256xf32, #tpu.memory_space<vmem>>) attributes {dimension_semantics = [#tpu.dimension_semantics<parallel>], iteration_bounds = array<i64: 2>, scalar_prefetch = 0 : i64, scratch_operands = 0 : i64, tpu.core_type = #tpu.core_type<tc>, window_params = [{transform_indices = @transform_0, window_bounds = array<i64: 32, 256>}, {transform_indices = @transform_1, window_bounds = array<i64: 32, 128>}, {pipeline_mode = #tpu.pipeline_mode<synchronous>, transform_indices = @transform_2, window_bounds = array<i64: 256, 128>}, {pipeline_mode = #tpu.pipeline_mode<synchronous>, transform_indices = @transform_3, window_bounds = array<i64: 1, 128>}, {pipeline_mode = #tpu.pipeline_mode<synchronous>, transform_indices = @transform_4, window_bounds = array<i64: 128, 256>}, {pipeline_mode = #tpu.pipeline_mode<synchronous>, transform_indices = @transform_5, window_bounds = array<i64: 1, 256>}, {pipeline_mode = #tpu.pipeline_mode<synchronous>, transform_indices = @transform_6, window_bounds = array<i64: 128, 128>}, {pipeline_mode = #tpu.pipeline_mode<synchronous>, transform_indices = @transform_7, window_bounds = array<i64: 1, 128>}, {pipeline_mode = #tpu.pipeline_mode<synchronous>, transform_indices = @transform_8, window_bounds = array<i64: 128, 128>}, {pipeline_mode = #tpu.pipeline_mode<synchronous>, transform_indices = @transform_9, window_bounds = array<i64: 1, 128>}, {transform_indices = @transform_10, window_bounds = array<i64: 32, 128>}, {transform_indices = @transform_11, window_bounds = array<i64: 32, 256>}]} {
    %c0 = arith.constant 0 : index
    %c0_0 = arith.constant 0 : index
    %0 = vector.load %arg1[%c0, %c0_0] : memref<32x256xbf16, #tpu.memory_space<vmem>>, vector<32x256xbf16>
    %c0_1 = arith.constant 0 : index
    %c0_2 = arith.constant 0 : index
    %1 = vector.load %arg3[%c0_1, %c0_2] : memref<256x128xbf16, #tpu.memory_space<vmem>>, vector<256x128xbf16>
    %cst = arith.constant dense<0.000000e+00> : vector<32x128xf32>
    %2 = tpu.matmul %0, %1, %cst {dimension_numbers = #tpu.dot_dimension_numbers<[1], [0], [0], [1], [0, 0, 1, 1], [], []>} : vector<32x256xbf16>, vector<256x128xbf16>, vector<32x128xf32> -> vector<32x128xf32>
    %c0_3 = arith.constant 0 : index
    %c0_4 = arith.constant 0 : index
    %3 = vector.load %arg4[%c0_3, %c0_4] : memref<1x128xf32, #tpu.memory_space<vmem>>, vector<1x128xf32>
    %4 = vector.broadcast %3 : vector<1x128xf32> to vector<32x128xf32>
    %5 = arith.addf %2, %4 : vector<32x128xf32>
    %cst_5 = arith.constant 0.000000e+00 : f32
    %6 = vector.broadcast %cst_5 : f32 to vector<32x128xf32>
    %7 = arith.maximumf %5, %6 : vector<32x128xf32>
    %8 = arith.truncf %7 : vector<32x128xf32> to vector<32x128xbf16>
    %c0_6 = arith.constant 0 : index
    %c0_7 = arith.constant 0 : index
    %9 = vector.load %arg5[%c0_6, %c0_7] : memref<128x256xbf16, #tpu.memory_space<vmem>>, vector<128x256xbf16>
    %cst_8 = arith.constant dense<0.000000e+00> : vector<32x256xf32>
    %10 = tpu.matmul %8, %9, %cst_8 {dimension_numbers = #tpu.dot_dimension_numbers<[1], [0], [0], [1], [0, 0, 1, 1], [], []>} : vector<32x128xbf16>, vector<128x256xbf16>, vector<32x256xf32> -> vector<32x256xf32>
    %c0_9 = arith.constant 0 : index
    %c0_10 = arith.constant 0 : index
    %11 = vector.load %arg6[%c0_9, %c0_10] : memref<1x256xf32, #tpu.memory_space<vmem>>, vector<1x256xf32>
    %12 = vector.broadcast %11 : vector<1x256xf32> to vector<32x256xf32>
    %13 = arith.addf %10, %12 : vector<32x256xf32>
    %c0_11 = arith.constant 0 : index
    %c0_12 = arith.constant 0 : index
    %14 = vector.load %arg12[%c0_11, %c0_12] : memref<32x256xf32, #tpu.memory_space<vmem>>, vector<32x256xf32>
    tpu.vector_store %arg12[%c0_11, %c0_12], %13 {strides = array<i32>} : memref<32x256xf32, #tpu.memory_space<vmem>>, vector<32x256xf32>,
    %15 = vector.extract_strided_slice %13 {offsets = [0, 0], sizes = [32, 128], strides = [1, 1]} : vector<32x256xf32> to vector<32x128xf32>
    %16 = vector.extract_strided_slice %13 {offsets = [0, 128], sizes = [32, 128], strides = [1, 1]} : vector<32x256xf32> to vector<32x128xf32>
    %c0_13 = arith.constant 0 : index
    %c0_14 = arith.constant 0 : index
    %17 = vector.load %arg2[%c0_13, %c0_14] : memref<32x128xf32, #tpu.memory_space<vmem>>, vector<32x128xf32>
    %cst_15 = arith.constant 5.000000e-01 : f32
    %18 = vector.broadcast %cst_15 : f32 to vector<32x128xf32>
    %19 = arith.mulf %16, %18 : vector<32x128xf32>
    %20 = math.exp %19 : vector<32x128xf32>
    %21 = arith.mulf %17, %20 : vector<32x128xf32>
    %22 = arith.addf %15, %21 : vector<32x128xf32>
    %23 = arith.truncf %22 : vector<32x128xf32> to vector<32x128xbf16>
    %c0_16 = arith.constant 0 : index
    %c0_17 = arith.constant 0 : index
    %24 = vector.load %arg7[%c0_16, %c0_17] : memref<128x128xbf16, #tpu.memory_space<vmem>>, vector<128x128xbf16>
    %cst_18 = arith.constant dense<0.000000e+00> : vector<32x128xf32>
    %25 = tpu.matmul %23, %24, %cst_18 {dimension_numbers = #tpu.dot_dimension_numbers<[1], [0], [0], [1], [0, 0, 1, 1], [], []>} : vector<32x128xbf16>, vector<128x128xbf16>, vector<32x128xf32> -> vector<32x128xf32>
    %c0_19 = arith.constant 0 : index
    %c0_20 = arith.constant 0 : index
    %26 = vector.load %arg8[%c0_19, %c0_20] : memref<1x128xf32, #tpu.memory_space<vmem>>, vector<1x128xf32>
    %27 = vector.broadcast %26 : vector<1x128xf32> to vector<32x128xf32>
    %28 = arith.addf %25, %27 : vector<32x128xf32>
    %cst_21 = arith.constant 0.000000e+00 : f32
    %29 = vector.broadcast %cst_21 : f32 to vector<32x128xf32>
    %30 = arith.maximumf %28, %29 : vector<32x128xf32>
    %31 = arith.truncf %30 : vector<32x128xf32> to vector<32x128xbf16>
    %c0_22 = arith.constant 0 : index
    %c0_23 = arith.constant 0 : index
    %32 = vector.load %arg9[%c0_22, %c0_23] : memref<128x128xbf16, #tpu.memory_space<vmem>>, vector<128x128xbf16>
    %cst_24 = arith.constant dense<0.000000e+00> : vector<32x128xf32>
    %33 = tpu.matmul %31, %32, %cst_24 {dimension_numbers = #tpu.dot_dimension_numbers<[1], [0], [0], [1], [0, 0, 1, 1], [], []>} : vector<32x128xbf16>, vector<128x128xbf16>, vector<32x128xf32> -> vector<32x128xf32>
    %c0_25 = arith.constant 0 : index
    %c0_26 = arith.constant 0 : index
    %34 = vector.load %arg10[%c0_25, %c0_26] : memref<1x128xf32, #tpu.memory_space<vmem>>, vector<1x128xf32>
    %35 = vector.broadcast %34 : vector<1x128xf32> to vector<32x128xf32>
    %36 = arith.addf %33, %35 : vector<32x128xf32>
    %cst_27 = arith.constant dense<0xFF800000> : vector<32xf32>
    %37 = vector.multi_reduction <maximumf>, %36, %cst_27 [1] : vector<32x128xf32> to vector<32xf32>
    %38 = vector.shape_cast %37 : vector<32xf32> to vector<32x1xf32>
    %39 = vector.broadcast %38 : vector<32x1xf32> to vector<32x128xf32>
    %40 = arith.subf %36, %39 : vector<32x128xf32>
    %41 = math.exp %40 : vector<32x128xf32>
    %cst_28 = arith.constant dense<0.000000e+00> : vector<32xf32>
    %42 = vector.multi_reduction <add>, %41, %cst_28 [1] : vector<32x128xf32> to vector<32xf32>
    %43 = vector.shape_cast %42 : vector<32xf32> to vector<32x1xf32>
    %44 = tpu.reciprocal %43 : vector<32x1xf32> -> vector<32x1xf32>
    %45 = vector.broadcast %44 : vector<32x1xf32> to vector<32x128xf32>
    %46 = arith.mulf %41, %45 : vector<32x128xf32>
    %c0_29 = arith.constant 0 : index
    %c0_30 = arith.constant 0 : index
    %47 = vector.load %arg11[%c0_29, %c0_30] : memref<32x128xf32, #tpu.memory_space<vmem>>, vector<32x128xf32>
    tpu.vector_store %arg11[%c0_29, %c0_30], %46 {strides = array<i32>} : memref<32x128xf32, #tpu.memory_space<vmem>>, vector<32x128xf32>,
    return
  }
  func.func @transform_0(%arg0: i32) -> (i32, i32) {
    %c0_i32 = arith.constant 0 : i32
    %c0_i32_0 = arith.constant 0 : i32
    return %arg0, %c0_i32 : i32, i32
  }
  func.func @transform_1(%arg0: i32) -> (i32, i32) {
    %c0_i32 = arith.constant 0 : i32
    %c0_i32_0 = arith.constant 0 : i32
    return %arg0, %c0_i32 : i32, i32
  }
  func.func @transform_2(%arg0: i32) -> (i32, i32) {
    %c0_i32 = arith.constant 0 : i32
    %c0_i32_0 = arith.constant 0 : i32
    %c0_i32_1 = arith.constant 0 : i32
    return %c0_i32, %c0_i32_0 : i32, i32
  }
  func.func @transform_3(%arg0: i32) -> (i32, i32) {
    %c0_i32 = arith.constant 0 : i32
    %c0_i32_0 = arith.constant 0 : i32
    %c0_i32_1 = arith.constant 0 : i32
    return %c0_i32, %c0_i32_0 : i32, i32
  }
  func.func @transform_4(%arg0: i32) -> (i32, i32) {
    %c0_i32 = arith.constant 0 : i32
    %c0_i32_0 = arith.constant 0 : i32
    %c0_i32_1 = arith.constant 0 : i32
    return %c0_i32, %c0_i32_0 : i32, i32
  }
  func.func @transform_5(%arg0: i32) -> (i32, i32) {
    %c0_i32 = arith.constant 0 : i32
    %c0_i32_0 = arith.constant 0 : i32
    %c0_i32_1 = arith.constant 0 : i32
    return %c0_i32, %c0_i32_0 : i32, i32
  }
  func.func @transform_6(%arg0: i32) -> (i32, i32) {
    %c0_i32 = arith.constant 0 : i32
    %c0_i32_0 = arith.constant 0 : i32
    %c0_i32_1 = arith.constant 0 : i32
    return %c0_i32, %c0_i32_0 : i32, i32
  }
  func.func @transform_7(%arg0: i32) -> (i32, i32) {
    %c0_i32 = arith.constant 0 : i32
    %c0_i32_0 = arith.constant 0 : i32
    %c0_i32_1 = arith.constant 0 : i32
    return %c0_i32, %c0_i32_0 : i32, i32
  }
  func.func @transform_8(%arg0: i32) -> (i32, i32) {
    %c0_i32 = arith.constant 0 : i32
    %c0_i32_0 = arith.constant 0 : i32
    %c0_i32_1 = arith.constant 0 : i32
    return %c0_i32, %c0_i32_0 : i32, i32
  }
  func.func @transform_9(%arg0: i32) -> (i32, i32) {
    %c0_i32 = arith.constant 0 : i32
    %c0_i32_0 = arith.constant 0 : i32
    %c0_i32_1 = arith.constant 0 : i32
    return %c0_i32, %c0_i32_0 : i32, i32
  }
  func.func @transform_10(%arg0: i32) -> (i32, i32) {
    %c0_i32 = arith.constant 0 : i32
    %c0_i32_0 = arith.constant 0 : i32
    return %arg0, %c0_i32 : i32, i32
  }
  func.func @transform_11(%arg0: i32) -> (i32, i32) {
    %c0_i32 = arith.constant 0 : i32
    %c0_i32_0 = arith.constant 0 : i32
    return %arg0, %c0_i32 : i32, i32
  }
}

module attributes {stable_mosaic.version = 11 : i64} {
  func.func @dcv_kernel(%arg0: i32, %arg1: memref<32x256xbf16, #tpu.memory_space<vmem>>, %arg2: memref<32x128xf32, #tpu.memory_space<vmem>>, %arg3: memref<256x128xbf16, #tpu.memory_space<vmem>>, %arg4: memref<1x128xf32, #tpu.memory_space<vmem>>, %arg5: memref<128x256xbf16, #tpu.memory_space<vmem>>, %arg6: memref<1x256xf32, #tpu.memory_space<vmem>>, %arg7: memref<128x128xbf16, #tpu.memory_space<vmem>>, %arg8: memref<1x128xf32, #tpu.memory_space<vmem>>, %arg9: memref<128x128xbf16, #tpu.memory_space<vmem>>, %arg10: memref<1x128xf32, #tpu.memory_space<vmem>>, %arg11: memref<32x128xf32, #tpu.memory_space<vmem>>, %arg12: memref<32x256xf32, #tpu.memory_space<vmem>>) attributes {dimension_semantics = [#tpu.dimension_semantics<parallel>], iteration_bounds = array<i64: 2>, scalar_prefetch = 0 : i64, scratch_operands = 0 : i64, tpu.core_type = #tpu.core_type<tc>, window_params = [{transform_indices = @transform_0, window_bounds = array<i64: 32, 256>}, {transform_indices = @transform_1, window_bounds = array<i64: 32, 128>}, {pipeline_mode = #tpu.pipeline_mode<synchronous>, transform_indices = @transform_2, window_bounds = array<i64: 256, 128>}, {pipeline_mode = #tpu.pipeline_mode<synchronous>, transform_indices = @transform_3, window_bounds = array<i64: 1, 128>}, {pipeline_mode = #tpu.pipeline_mode<synchronous>, transform_indices = @transform_4, window_bounds = array<i64: 128, 256>}, {pipeline_mode = #tpu.pipeline_mode<synchronous>, transform_indices = @transform_5, window_bounds = array<i64: 1, 256>}, {pipeline_mode = #tpu.pipeline_mode<synchronous>, transform_indices = @transform_6, window_bounds = array<i64: 128, 128>}, {pipeline_mode = #tpu.pipeline_mode<synchronous>, transform_indices = @transform_7, window_bounds = array<i64: 1, 128>}, {pipeline_mode = #tpu.pipeline_mode<synchronous>, transform_indices = @transform_8, window_bounds = array<i64: 128, 128>}, {pipeline_mode = #tpu.pipeline_mode<synchronous>, transform_indices = @transform_9, window_bounds = array<i64: 1, 128>}, {transform_indices = @transform_10, window_bounds = array<i64: 32, 128>}, {transform_indices = @transform_11, window_bounds = array<i64: 32, 256>}]} {
    %c0 = arith.constant 0 : index
    %c0_0 = arith.constant 0 : index
    %0 = vector.load %arg1[%c0, %c0_0] : memref<32x256xbf16, #tpu.memory_space<vmem>>, vector<32x256xbf16>
    %c0_1 = arith.constant 0 : index
    %c0_2 = arith.constant 0 : index
    %1 = vector.load %arg3[%c0_1, %c0_2] : memref<256x128xbf16, #tpu.memory_space<vmem>>, vector<256x128xbf16>
    %cst = arith.constant dense<0.000000e+00> : vector<32x128xf32>
    %2 = tpu.matmul %0, %1, %cst {dimension_numbers = #tpu.dot_dimension_numbers<[1], [0], [0], [1], [0, 0, 1, 1], [], []>} : vector<32x256xbf16>, vector<256x128xbf16>, vector<32x128xf32> -> vector<32x128xf32>
    %c0_3 = arith.constant 0 : index
    %c0_4 = arith.constant 0 : index
    %3 = vector.load %arg4[%c0_3, %c0_4] : memref<1x128xf32, #tpu.memory_space<vmem>>, vector<1x128xf32>
    %4 = vector.broadcast %3 : vector<1x128xf32> to vector<32x128xf32>
    %5 = arith.addf %2, %4 : vector<32x128xf32>
    %cst_5 = arith.constant 0.000000e+00 : f32
    %6 = vector.broadcast %cst_5 : f32 to vector<32x128xf32>
    %7 = arith.maximumf %5, %6 : vector<32x128xf32>
    %8 = arith.truncf %7 : vector<32x128xf32> to vector<32x128xbf16>
    %c0_6 = arith.constant 0 : index
    %c0_7 = arith.constant 0 : index
    %9 = vector.load %arg5[%c0_6, %c0_7] : memref<128x256xbf16, #tpu.memory_space<vmem>>, vector<128x256xbf16>
    %cst_8 = arith.constant dense<0.000000e+00> : vector<32x256xf32>
    %10 = tpu.matmul %8, %9, %cst_8 {dimension_numbers = #tpu.dot_dimension_numbers<[1], [0], [0], [1], [0, 0, 1, 1], [], []>} : vector<32x128xbf16>, vector<128x256xbf16>, vector<32x256xf32> -> vector<32x256xf32>
    %c0_9 = arith.constant 0 : index
    %c0_10 = arith.constant 0 : index
    %11 = vector.load %arg6[%c0_9, %c0_10] : memref<1x256xf32, #tpu.memory_space<vmem>>, vector<1x256xf32>
    %12 = vector.broadcast %11 : vector<1x256xf32> to vector<32x256xf32>
    %13 = arith.addf %10, %12 : vector<32x256xf32>
    %c0_11 = arith.constant 0 : index
    %c0_12 = arith.constant 0 : index
    %14 = vector.load %arg12[%c0_11, %c0_12] : memref<32x256xf32, #tpu.memory_space<vmem>>, vector<32x256xf32>
    tpu.vector_store %arg12[%c0_11, %c0_12], %13 {strides = array<i32>} : memref<32x256xf32, #tpu.memory_space<vmem>>, vector<32x256xf32>,
    %15 = vector.extract_strided_slice %13 {offsets = [0, 0], sizes = [32, 128], strides = [1, 1]} : vector<32x256xf32> to vector<32x128xf32>
    %16 = vector.extract_strided_slice %13 {offsets = [0, 128], sizes = [32, 128], strides = [1, 1]} : vector<32x256xf32> to vector<32x128xf32>
    %c0_13 = arith.constant 0 : index
    %c0_14 = arith.constant 0 : index
    %17 = vector.load %arg2[%c0_13, %c0_14] : memref<32x128xf32, #tpu.memory_space<vmem>>, vector<32x128xf32>
    %cst_15 = arith.constant 5.000000e-01 : f32
    %18 = vector.broadcast %cst_15 : f32 to vector<32x128xf32>
    %19 = arith.mulf %16, %18 : vector<32x128xf32>
    %20 = math.exp %19 : vector<32x128xf32>
    %21 = arith.mulf %17, %20 : vector<32x128xf32>
    %22 = arith.addf %15, %21 : vector<32x128xf32>
    %23 = arith.truncf %22 : vector<32x128xf32> to vector<32x128xbf16>
    %c0_16 = arith.constant 0 : index
    %c0_17 = arith.constant 0 : index
    %24 = vector.load %arg7[%c0_16, %c0_17] : memref<128x128xbf16, #tpu.memory_space<vmem>>, vector<128x128xbf16>
    %cst_18 = arith.constant dense<0.000000e+00> : vector<32x128xf32>
    %25 = tpu.matmul %23, %24, %cst_18 {dimension_numbers = #tpu.dot_dimension_numbers<[1], [0], [0], [1], [0, 0, 1, 1], [], []>} : vector<32x128xbf16>, vector<128x128xbf16>, vector<32x128xf32> -> vector<32x128xf32>
    %c0_19 = arith.constant 0 : index
    %c0_20 = arith.constant 0 : index
    %26 = vector.load %arg8[%c0_19, %c0_20] : memref<1x128xf32, #tpu.memory_space<vmem>>, vector<1x128xf32>
    %27 = vector.broadcast %26 : vector<1x128xf32> to vector<32x128xf32>
    %28 = arith.addf %25, %27 : vector<32x128xf32>
    %cst_21 = arith.constant 0.000000e+00 : f32
    %29 = vector.broadcast %cst_21 : f32 to vector<32x128xf32>
    %30 = arith.maximumf %28, %29 : vector<32x128xf32>
    %31 = arith.truncf %30 : vector<32x128xf32> to vector<32x128xbf16>
    %c0_22 = arith.constant 0 : index
    %c0_23 = arith.constant 0 : index
    %32 = vector.load %arg9[%c0_22, %c0_23] : memref<128x128xbf16, #tpu.memory_space<vmem>>, vector<128x128xbf16>
    %cst_24 = arith.constant dense<0.000000e+00> : vector<32x128xf32>
    %33 = tpu.matmul %31, %32, %cst_24 {dimension_numbers = #tpu.dot_dimension_numbers<[1], [0], [0], [1], [0, 0, 1, 1], [], []>} : vector<32x128xbf16>, vector<128x128xbf16>, vector<32x128xf32> -> vector<32x128xf32>
    %c0_25 = arith.constant 0 : index
    %c0_26 = arith.constant 0 : index
    %34 = vector.load %arg10[%c0_25, %c0_26] : memref<1x128xf32, #tpu.memory_space<vmem>>, vector<1x128xf32>
    %35 = vector.broadcast %34 : vector<1x128xf32> to vector<32x128xf32>
    %36 = arith.addf %33, %35 : vector<32x128xf32>
    %cst_27 = arith.constant dense<0xFF800000> : vector<32xf32>
    %37 = vector.multi_reduction <maximumf>, %36, %cst_27 [1] : vector<32x128xf32> to vector<32xf32>
    %38 = vector.shape_cast %37 : vector<32xf32> to vector<32x1xf32>
    %39 = vector.broadcast %38 : vector<32x1xf32> to vector<32x128xf32>
    %40 = arith.subf %36, %39 : vector<32x128xf32>
    %41 = math.exp %40 : vector<32x128xf32>
    %cst_28 = arith.constant dense<0.000000e+00> : vector<32xf32>
    %42 = vector.multi_reduction <add>, %41, %cst_28 [1] : vector<32x128xf32> to vector<32xf32>
    %43 = vector.shape_cast %42 : vector<32xf32> to vector<32x1xf32>
    %44 = tpu.reciprocal %43 : vector<32x1xf32> -> vector<32x1xf32>
    %45 = vector.broadcast %44 : vector<32x1xf32> to vector<32x128xf32>
    %46 = arith.mulf %41, %45 : vector<32x128xf32>
    %c0_29 = arith.constant 0 : index
    %c0_30 = arith.constant 0 : index
    %47 = vector.load %arg11[%c0_29, %c0_30] : memref<32x128xf32, #tpu.memory_space<vmem>>, vector<32x128xf32>
    tpu.vector_store %arg11[%c0_29, %c0_30], %46 {strides = array<i32>} : memref<32x128xf32, #tpu.memory_space<vmem>>, vector<32x128xf32>,
    return
  }
  func.func @transform_0(%arg0: i32) -> (i32, i32) {
    %c0_i32 = arith.constant 0 : i32
    %c0_i32_0 = arith.constant 0 : i32
    return %arg0, %c0_i32 : i32, i32
  }
  func.func @transform_1(%arg0: i32) -> (i32, i32) {
    %c0_i32 = arith.constant 0 : i32
    %c0_i32_0 = arith.constant 0 : i32
    return %arg0, %c0_i32 : i32, i32
  }
  func.func @transform_2(%arg0: i32) -> (i32, i32) {
    %c0_i32 = arith.constant 0 : i32
    %c0_i32_0 = arith.constant 0 : i32
    %c0_i32_1 = arith.constant 0 : i32
    return %c0_i32, %c0_i32_0 : i32, i32
  }
  func.func @transform_3(%arg0: i32) -> (i32, i32) {
    %c0_i32 = arith.constant 0 : i32
    %c0_i32_0 = arith.constant 0 : i32
    %c0_i32_1 = arith.constant 0 : i32
    return %c0_i32, %c0_i32_0 : i32, i32
  }
  func.func @transform_4(%arg0: i32) -> (i32, i32) {
    %c0_i32 = arith.constant 0 : i32
    %c0_i32_0 = arith.constant 0 : i32
    %c0_i32_1 = arith.constant 0 : i32
    return %c0_i32, %c0_i32_0 : i32, i32
  }
  func.func @transform_5(%arg0: i32) -> (i32, i32) {
    %c0_i32 = arith.constant 0 : i32
    %c0_i32_0 = arith.constant 0 : i32
    %c0_i32_1 = arith.constant 0 : i32
    return %c0_i32, %c0_i32_0 : i32, i32
  }
  func.func @transform_6(%arg0: i32) -> (i32, i32) {
    %c0_i32 = arith.constant 0 : i32
    %c0_i32_0 = arith.constant 0 : i32
    %c0_i32_1 = arith.constant 0 : i32
    return %c0_i32, %c0_i32_0 : i32, i32
  }
  func.func @transform_7(%arg0: i32) -> (i32, i32) {
    %c0_i32 = arith.constant 0 : i32
    %c0_i32_0 = arith.constant 0 : i32
    %c0_i32_1 = arith.constant 0 : i32
    return %c0_i32, %c0_i32_0 : i32, i32
  }
  func.func @transform_8(%arg0: i32) -> (i32, i32) {
    %c0_i32 = arith.constant 0 : i32
    %c0_i32_0 = arith.constant 0 : i32
    %c0_i32_1 = arith.constant 0 : i32
    return %c0_i32, %c0_i32_0 : i32, i32
  }
  func.func @transform_9(%arg0: i32) -> (i32, i32) {
    %c0_i32 = arith.constant 0 : i32
    %c0_i32_0 = arith.constant 0 : i32
    %c0_i32_1 = arith.constant 0 : i32
    return %c0_i32, %c0_i32_0 : i32, i32
  }
  func.func @transform_10(%arg0: i32) -> (i32, i32) {
    %c0_i32 = arith.constant 0 : i32
    %c0_i32_0 = arith.constant 0 : i32
    return %arg0, %c0_i32 : i32, i32
  }
  func.func @transform_11(%arg0: i32) -> (i32, i32) {
    %c0_i32 = arith.constant 0 : i32
    %c0_i32_0 = arith.constant 0 : i32
    return %arg0, %c0_i32 : i32, i32
  }
}

</mosaic_0001>

<llo_original>
// kernel: tpu_custom_call.1
$region0: #{tpu_custom_call.1}
  #allocation0 [shape = 'u32[]', space=smem, size = 0x4, offset = 0x4, fixed_abs, tag = 'smem constant byte address 0x4 - core index']
  #allocation1 [shape = 'u32[144,128]{1,0:T(1,128)}', space=vmem, size = 0x12000, scoped, tag = 'internal scratch']
  %s0 = inlined_call_operand.hbm [shape: bf16[64,256], index: 0, kind: input, shape index: {}]
  %s1 = inlined_call_operand.hbm [shape: f32[64,128], index: 1, kind: input, shape index: {}]
  %s2 = inlined_call_operand.hbm [shape: bf16[256,128], index: 2, kind: input, shape index: {}]
  %s3 = inlined_call_operand.vmem [shape: f32[1,128], index: 3, kind: input, shape index: {}]
  %s4 = inlined_call_operand.hbm [shape: bf16[128,256], index: 4, kind: input, shape index: {}]
  %s5 = inlined_call_operand.vmem [shape: f32[1,256], index: 5, kind: input, shape index: {}]
  %s6 = inlined_call_operand.hbm [shape: bf16[128,128], index: 6, kind: input, shape index: {}]
  %s7 = inlined_call_operand.vmem [shape: f32[1,128], index: 7, kind: input, shape index: {}]
  %s8 = inlined_call_operand.hbm [shape: bf16[128,128], index: 8, kind: input, shape index: {}]
  %s9 = inlined_call_operand.vmem [shape: f32[1,128], index: 9, kind: input, shape index: {}]
  %s10 = inlined_call_operand.hbm [shape: f32[64,128], index: 10, kind: output, shape index: {0}]
  %s11 = inlined_call_operand.hbm [shape: f32[64,256], index: 11, kind: output, shape index: {1}]
  %12 = xla_tuple %s10, %s11
  %s13 = sld [smem:[#allocation0]]
  $region105: #{tpu_custom_call.1} parent=0
    _
  %s15 = ssub.s32 1, %s13
  %s16 = scalar_select 0, %s15, %s13
  $region1: #{tpu_custom_call.1} parent=0
    #allocation2 [shape = 'u8[32768]{0}', space=vmem, size = 0x8000, scoped, tag = 'input window, operand 0']
    #allocation3 [shape = 's32[2]{0}', space=sflag, size = 0x8, scoped, tag = 'scoped memory for tpu_custom_call.1']
    #allocation4 [shape = 's32[2]{0}', space=sflag, size = 0x8, scoped, tag = 'scoped memory for tpu_custom_call.1']
    #allocation5 [shape = 'u8[32768]{0}', space=vmem, size = 0x8000, scoped, tag = 'input window, operand 1']
    #allocation6 [shape = 's32[2]{0}', space=sflag, size = 0x8, scoped, tag = 'scoped memory for tpu_custom_call.1']
    #allocation7 [shape = 'u8[65536]{0}', space=vmem, size = 0x10000, scoped, tag = 'input window, operand 2, single buffered']
    #allocation8 [shape = 'u8[65536]{0}', space=vmem, size = 0x10000, scoped, tag = 'input window, operand 4, single buffered']
    #allocation9 [shape = 's32[1]{0}', space=sflag, size = 0x4, scoped, tag = 'scoped memory for tpu_custom_call.1']
    #allocation10 [shape = 'u8[32768]{0}', space=vmem, size = 0x8000, scoped, tag = 'input window, operand 6, single buffered']
    #allocation11 [shape = 'u8[32768]{0}', space=vmem, size = 0x8000, scoped, tag = 'input window, operand 8, single buffered']
    #allocation12 [shape = 's32[1]{0}', space=sflag, size = 0x4, scoped, tag = 'scoped memory for tpu_custom_call.1']
    #allocation13 [shape = 'u8[32768]{0}', space=vmem, size = 0x8000, scoped, tag = 'output window, operand 0']
    #allocation14 [shape = 'u8[65536]{0}', space=vmem, size = 0x10000, scoped, tag = 'output window, operand 1']
    #allocation15 [shape = 's32[2]{0}', space=sflag, size = 0x8, scoped, tag = 'scoped memory for tpu_custom_call.1']
    %17 = vsyncpa [#allocation3], 0
    %s18 = scalar_lea.sflag [#allocation3], 1
    %19 = vsyncpa %s18, 0
    %20 = vsyncpa [#allocation6], 0
    %s21 = scalar_lea.sflag [#allocation6], 1
    %22 = vsyncpa %s21, 0
    %23 = vsyncpa [#allocation9], 0
    %24 = vsyncpa [#allocation12], 0
    %25 = vsyncpa [#allocation4], 0
    %s26 = scalar_lea.sflag [#allocation4], 1
    %27 = vsyncpa %s26, 0
    %28 = vsyncpa [#allocation15], 0
    %s29 = scalar_lea.sflag [#allocation15], 1
    %30 = vsyncpa %s29, 0
    loop: start=0, step=1, limit=4
    $region2: #{tpu_custom_call.1} parent=1 // loop_pre_header
      _
    $region3: #{tpu_custom_call.1} parent=1 // loop_header
      %s32 = sphi 0, %s36
      %p33 = scmp.ge.s32.totalorder %s32, 4
      %s42 = sphi 0, %s44
      %s45 = sphi 0, %s42
      %s46 = sphi 0, %s45
      %s62 = sphi 0, %s46
      %s68 = sphi 0, %s70
      %s71 = sphi 0, %s68
      %s72 = sphi 0, %s71
      %s88 = sphi 0, %s72
      %s92 = sphi 0, %s92
      %s94 = sphi 0, %s92
      %s95 = sphi 0, %s94
      %s109 = sphi 0, %s95
      %s113 = sphi 0, %s113
      %s115 = sphi 0, %s113
      %s116 = sphi 0, %s115
      %s130 = sphi 0, %s116
      %s134 = sphi 0, %s134
      %s136 = sphi 0, %s134
      %s137 = sphi 0, %s136
      %s151 = sphi 0, %s137
      %s155 = sphi 0, %s155
      %s157 = sphi 0, %s155
      %s158 = sphi 0, %s157
      %s172 = sphi 0, %s158
      %s176 = sphi 0, %s176
      %s178 = sphi 0, %s176
      %s179 = sphi 0, %s178
      %s193 = sphi 0, %s179
      %s197 = sphi 0, %s197
      %s199 = sphi 0, %s197
      %s200 = sphi 0, %s199
      %s214 = sphi 0, %s200
      %s218 = sphi 0, %s218
      %s220 = sphi 0, %s218
      %s221 = sphi 0, %s220
      %s235 = sphi 0, %s221
      %s239 = sphi 0, %s239
      %s241 = sphi 0, %s239
      %s242 = sphi 0, %s241
      %s256 = sphi 0, %s242
      %s262 = sphi 0, %s264
      %s265 = sphi 0, %s262
      %s266 = sphi 0, %s265
      %s282 = sphi 0, %s266
      %s288 = sphi 0, %s290
      %s291 = sphi 0, %s288
      %s292 = sphi 0, %s291
      %s308 = sphi 0, %s292
    $region4: #{tpu_custom_call.1} parent=1 // loop_header_branch
      %35 = sbr.rel (%p33) target = $region8
    $region5: #{tpu_custom_call.1} parent=1 // loop_body
      %s37 = ssub.s32 %s32, 1
      %s38 = ssub.s32 %s32, 2
      %s39 = sadd.s32 %s32, 1
      %s40 = ssub.s32 %s32, %s39
      %p41 = scmp.eq.s32.totalorder %s40, 0
      %s43 = sadd.s32 %s42, 1
      %s44 = scalar_select %p41, %s42, %s43
      %p47 = pneg %p41
      %p48 = scmp.eq.s32.totalorder %s32, 1
      %p49 = por %p47, %p48
      %p50 = scmp.ne.s32.totalorder %s42, %s45
      %p51 = scmp.eq.s32.totalorder %s32, 0
      %p52 = por %p50, %p51
      %p53 = scmp.ne.s32.totalorder %s42, %s45
      %p54 = scmp.eq.s32.totalorder %s37, 1
      %p55 = por %p53, %p54
      %p56 = scmp.ne.s32.totalorder %s45, %s46
      %p57 = scmp.eq.s32.totalorder %s37, 0
      %p58 = por %p56, %p57
      %p59 = scmp.ne.s32.totalorder %s45, %s46
      %p60 = scmp.eq.s32.totalorder %s38, 1
      %p61 = por %p59, %p60
      %p63 = scmp.ne.s32.totalorder %s46, %s62
      %p64 = scmp.eq.s32.totalorder %s38, 0
      %p65 = por %p63, %p64
      %s66 = ssub.s32 %s32, %s39
      %p67 = scmp.eq.s32.totalorder %s66, 0
      %s69 = sadd.s32 %s68, 1
      %s70 = scalar_select %p67, %s68, %s69
      %p73 = pneg %p67
      %p74 = scmp.eq.s32.totalorder %s32, 1
      %p75 = por %p73, %p74
      %p76 = scmp.ne.s32.totalorder %s68, %s71
      %p77 = scmp.eq.s32.totalorder %s32, 0
      %p78 = por %p76, %p77
      %p79 = scmp.ne.s32.totalorder %s68, %s71
      %p80 = scmp.eq.s32.totalorder %s37, 1
      %p81 = por %p79, %p80
      %p82 = scmp.ne.s32.totalorder %s71, %s72
      %p83 = scmp.eq.s32.totalorder %s37, 0
      %p84 = por %p82, %p83
      %p85 = scmp.ne.s32.totalorder %s71, %s72
      %p86 = scmp.eq.s32.totalorder %s38, 1
      %p87 = por %p85, %p86
      %p89 = scmp.ne.s32.totalorder %s72, %s88
      %p90 = scmp.eq.s32.totalorder %s38, 0
      %p91 = por %p89, %p90
      %s93 = sadd.s32 %s92, 1
      %p96 = scmp.eq.s32.totalorder %s32, 1
      %p97 = scmp.ne.s32.totalorder %s92, %s94
      %p98 = scmp.eq.s32.totalorder %s32, 0
      %p99 = por %p97, %p98
      %p100 = scmp.ne.s32.totalorder %s92, %s94
      %p101 = scmp.eq.s32.totalorder %s37, 1
      %p102 = por %p100, %p101
      %p103 = scmp.ne.s32.totalorder %s94, %s95
      %p104 = scmp.eq.s32.totalorder %s37, 0
      %p105 = por %p103, %p104
      %p106 = scmp.ne.s32.totalorder %s94, %s95
      %p107 = scmp.eq.s32.totalorder %s38, 1
      %p108 = por %p106, %p107
      %p110 = scmp.ne.s32.totalorder %s95, %s109
      %p111 = scmp.eq.s32.totalorder %s38, 0
      %p112 = por %p110, %p111
      %s114 = sadd.s32 %s113, 1
      %p117 = scmp.eq.s32.totalorder %s32, 1
      %p118 = scmp.ne.s32.totalorder %s113, %s115
      %p119 = scmp.eq.s32.totalorder %s32, 0
      %p120 = por %p118, %p119
      %p121 = scmp.ne.s32.totalorder %s113, %s115
      %p122 = scmp.eq.s32.totalorder %s37, 1
      %p123 = por %p121, %p122
      %p124 = scmp.ne.s32.totalorder %s115, %s116
      %p125 = scmp.eq.s32.totalorder %s37, 0
      %p126 = por %p124, %p125
      %p127 = scmp.ne.s32.totalorder %s115, %s116
      %p128 = scmp.eq.s32.totalorder %s38, 1
      %p129 = por %p127, %p128
      %p131 = scmp.ne.s32.totalorder %s116, %s130
      %p132 = scmp.eq.s32.totalorder %s38, 0
      %p133 = por %p131, %p132
      %s135 = sadd.s32 %s134, 1
      %p138 = scmp.eq.s32.totalorder %s32, 1
      %p139 = scmp.ne.s32.totalorder %s134, %s136
      %p140 = scmp.eq.s32.totalorder %s32, 0
      %p141 = por %p139, %p140
      %p142 = scmp.ne.s32.totalorder %s134, %s136
      %p143 = scmp.eq.s32.totalorder %s37, 1
      %p144 = por %p142, %p143
      %p145 = scmp.ne.s32.totalorder %s136, %s137
      %p146 = scmp.eq.s32.totalorder %s37, 0
      %p147 = por %p145, %p146
      %p148 = scmp.ne.s32.totalorder %s136, %s137
      %p149 = scmp.eq.s32.totalorder %s38, 1
      %p150 = por %p148, %p149
      %p152 = scmp.ne.s32.totalorder %s137, %s151
      %p153 = scmp.eq.s32.totalorder %s38, 0
      %p154 = por %p152, %p153
      %s156 = sadd.s32 %s155, 1
      %p159 = scmp.eq.s32.totalorder %s32, 1
      %p160 = scmp.ne.s32.totalorder %s155, %s157
      %p161 = scmp.eq.s32.totalorder %s32, 0
      %p162 = por %p160, %p161
      %p163 = scmp.ne.s32.totalorder %s155, %s157
      %p164 = scmp.eq.s32.totalorder %s37, 1
      %p165 = por %p163, %p164
      %p166 = scmp.ne.s32.totalorder %s157, %s158
      %p167 = scmp.eq.s32.totalorder %s37, 0
      %p168 = por %p166, %p167
      %p169 = scmp.ne.s32.totalorder %s157, %s158
      %p170 = scmp.eq.s32.totalorder %s38, 1
      %p171 = por %p169, %p170
      %p173 = scmp.ne.s32.totalorder %s158, %s172
      %p174 = scmp.eq.s32.totalorder %s38, 0
      %p175 = por %p173, %p174
      %s177 = sadd.s32 %s176, 1
      %p180 = scmp.eq.s32.totalorder %s32, 1
      %p181 = scmp.ne.s32.totalorder %s176, %s178
      %p182 = scmp.eq.s32.totalorder %s32, 0
      %p183 = por %p181, %p182
      %p184 = scmp.ne.s32.totalorder %s176, %s178
      %p185 = scmp.eq.s32.totalorder %s37, 1
      %p186 = por %p184, %p185
      %p187 = scmp.ne.s32.totalorder %s178, %s179
      %p188 = scmp.eq.s32.totalorder %s37, 0
      %p189 = por %p187, %p188
      %p190 = scmp.ne.s32.totalorder %s178, %s179
      %p191 = scmp.eq.s32.totalorder %s38, 1
      %p192 = por %p190, %p191
      %p194 = scmp.ne.s32.totalorder %s179, %s193
      %p195 = scmp.eq.s32.totalorder %s38, 0
      %p196 = por %p194, %p195
      %s198 = sadd.s32 %s197, 1
      %p201 = scmp.eq.s32.totalorder %s32, 1
      %p202 = scmp.ne.s32.totalorder %s197, %s199
      %p203 = scmp.eq.s32.totalorder %s32, 0
      %p204 = por %p202, %p203
      %p205 = scmp.ne.s32.totalorder %s197, %s199
      %p206 = scmp.eq.s32.totalorder %s37, 1
      %p207 = por %p205, %p206
      %p208 = scmp.ne.s32.totalorder %s199, %s200
      %p209 = scmp.eq.s32.totalorder %s37, 0
      %p210 = por %p208, %p209
      %p211 = scmp.ne.s32.totalorder %s199, %s200
      %p212 = scmp.eq.s32.totalorder %s38, 1
      %p213 = por %p211, %p212
      %p215 = scmp.ne.s32.totalorder %s200, %s214
      %p216 = scmp.eq.s32.totalorder %s38, 0
      %p217 = por %p215, %p216
      %s219 = sadd.s32 %s218, 1
      %p222 = scmp.eq.s32.totalorder %s32, 1
      %p223 = scmp.ne.s32.totalorder %s218, %s220
      %p224 = scmp.eq.s32.totalorder %s32, 0
      %p225 = por %p223, %p224
      %p226 = scmp.ne.s32.totalorder %s218, %s220
      %p227 = scmp.eq.s32.totalorder %s37, 1
      %p228 = por %p226, %p227
      %p229 = scmp.ne.s32.totalorder %s220, %s221
      %p230 = scmp.eq.s32.totalorder %s37, 0
      %p231 = por %p229, %p230
      %p232 = scmp.ne.s32.totalorder %s220, %s221
      %p233 = scmp.eq.s32.totalorder %s38, 1
      %p234 = por %p232, %p233
      %p236 = scmp.ne.s32.totalorder %s221, %s235
      %p237 = scmp.eq.s32.totalorder %s38, 0
      %p238 = por %p236, %p237
      %s240 = sadd.s32 %s239, 1
      %p243 = scmp.eq.s32.totalorder %s32, 1
      %p244 = scmp.ne.s32.totalorder %s239, %s241
      %p245 = scmp.eq.s32.totalorder %s32, 0
      %p246 = por %p244, %p245
      %p247 = scmp.ne.s32.totalorder %s239, %s241
      %p248 = scmp.eq.s32.totalorder %s37, 1
      %p249 = por %p247, %p248
      %p250 = scmp.ne.s32.totalorder %s241, %s242
      %p251 = scmp.eq.s32.totalorder %s37, 0
      %p252 = por %p250, %p251
      %p253 = scmp.ne.s32.totalorder %s241, %s242
      %p254 = scmp.eq.s32.totalorder %s38, 1
      %p255 = por %p253, %p254
      %p257 = scmp.ne.s32.totalorder %s242, %s256
      %p258 = scmp.eq.s32.totalorder %s38, 0
      %p259 = por %p257, %p258
      %s260 = ssub.s32 %s32, %s39
      %p261 = scmp.eq.s32.totalorder %s260, 0
      %s263 = sadd.s32 %s262, 1
      %s264 = scalar_select %p261, %s262, %s263
      %p267 = pneg %p261
      %p268 = scmp.eq.s32.totalorder %s32, 1
      %p269 = por %p267, %p268
      %p270 = scmp.ne.s32.totalorder %s262, %s265
      %p271 = scmp.eq.s32.totalorder %s32, 0
      %p272 = por %p270, %p271
      %p273 = scmp.ne.s32.totalorder %s262, %s265
      %p274 = scmp.eq.s32.totalorder %s37, 1
      %p275 = por %p273, %p274
      %p276 = scmp.ne.s32.totalorder %s265, %s266
      %p277 = scmp.eq.s32.totalorder %s37, 0
      %p278 = por %p276, %p277
      %p279 = scmp.ne.s32.totalorder %s265, %s266
      %p280 = scmp.eq.s32.totalorder %s38, 1
      %p281 = por %p279, %p280
      %p283 = scmp.ne.s32.totalorder %s266, %s282
      %p284 = scmp.eq.s32.totalorder %s38, 0
      %p285 = por %p283, %p284
      %s286 = ssub.s32 %s32, %s39
      %p287 = scmp.eq.s32.totalorder %s286, 0
      %s289 = sadd.s32 %s288, 1
      %s290 = scalar_select %p287, %s288, %s289
      %p293 = pneg %p287
      %p294 = scmp.eq.s32.totalorder %s32, 1
      %p295 = por %p293, %p294
      %p296 = scmp.ne.s32.totalorder %s288, %s291
      %p297 = scmp.eq.s32.totalorder %s32, 0
      %p298 = por %p296, %p297
      %p299 = scmp.ne.s32.totalorder %s288, %s291
      %p300 = scmp.eq.s32.totalorder %s37, 1
      %p301 = por %p299, %p300
      %p302 = scmp.ne.s32.totalorder %s291, %s292
      %p303 = scmp.eq.s32.totalorder %s37, 0
      %p304 = por %p302, %p303
      %p305 = scmp.ne.s32.totalorder %s291, %s292
      %p306 = scmp.eq.s32.totalorder %s38, 1
      %p307 = por %p305, %p306
      %p309 = scmp.ne.s32.totalorder %s292, %s308
      %p310 = scmp.eq.s32.totalorder %s38, 0
      %p311 = por %p309, %p310
      %p312 = scmp.le.s32.totalorder 1, %s32
      %p313 = scmp.lt.s32.totalorder %s32, 3
      %p314 = pnand %p312, %p313
      %p315 = pneg %p314
      // Predicated region
      $region9: #{tpu_custom_call.1} parent=5 // pred_check
        _
      $region10: #{tpu_custom_call.1} parent=5 // pred_check_branch
        %317 = sbr.rel (%p314) target = $region12
      $region11: #{tpu_custom_call.1} parent=5 // pred_region
        %s318 = ssub.s32 %s32, 1
        // Predicated region
        $region13: #{tpu_custom_call.1} parent=11 // pred_check
          %p319 = pneg %p105
        $region14: #{tpu_custom_call.1} parent=11 // pred_check_branch
          %321 = sbr.rel (%p319) target = $region16
        $region15: #{tpu_custom_call.1} parent=11 // pred_region
          %s323 = ssub.s32 2048, 2048
          %324 = vsyncadd [#allocation6], %s323
          %s325 = sshll.u32 [#allocation7], 4
          %s326 = int_to_ptr.vmem [resolvable:$true] %s325
          %331 = dma.hbm_to_vmem [thread:$0]  %s2, 2048, %s326, [#allocation6], 64, 64, 4
        $region16: #{tpu_custom_call.1} parent=11 // pred_fallthru
          _
        // Predicated region
        $region17: #{tpu_custom_call.1} parent=11 // pred_check
          %p332 = pneg %p126
        $region18: #{tpu_custom_call.1} parent=11 // pred_check_branch
          %334 = sbr.rel (%p332) target = $region20
        $region19: #{tpu_custom_call.1} parent=11 // pred_region
          _
        $region20: #{tpu_custom_call.1} parent=11 // pred_fallthru
          _
        // Predicated region
        $region21: #{tpu_custom_call.1} parent=11 // pred_check
          %p335 = pneg %p147
        $region22: #{tpu_custom_call.1} parent=11 // pred_check_branch
          %337 = sbr.rel (%p335) target = $region24
        $region23: #{tpu_custom_call.1} parent=11 // pred_region
          %s339 = ssub.s32 2048, 2048
          %340 = vsyncadd [#allocation9], %s339
          %s341 = sshll.u32 [#allocation8], 4
          %s342 = int_to_ptr.vmem [resolvable:$true] %s341
          %347 = dma.hbm_to_vmem [thread:$0]  %s4, 2048, %s342, [#allocation9], 128, 128, 8
        $region24: #{tpu_custom_call.1} parent=11 // pred_fallthru
          _
        // Predicated region
        $region25: #{tpu_custom_call.1} parent=11 // pred_check
          %p348 = pneg %p168
        $region26: #{tpu_custom_call.1} parent=11 // pred_check_branch
          %350 = sbr.rel (%p348) target = $region28
        $region27: #{tpu_custom_call.1} parent=11 // pred_region
          _
        $region28: #{tpu_custom_call.1} parent=11 // pred_fallthru
          _
        // Predicated region
        $region29: #{tpu_custom_call.1} parent=11 // pred_check
          %p351 = pneg %p189
        $region30: #{tpu_custom_call.1} parent=11 // pred_check_branch
          %353 = sbr.rel (%p351) target = $region32
        $region31: #{tpu_custom_call.1} parent=11 // pred_region
          %s355 = ssub.s32 1024, 1024
          %356 = vsyncadd [#allocation9], %s355
          %s357 = sshll.u32 [#allocation10], 4
          %s358 = int_to_ptr.vmem [resolvable:$true] %s357
          %363 = dma.hbm_to_vmem [thread:$0]  %s6, 1024, %s358, [#allocation9], 64, 64, 4
        $region32: #{tpu_custom_call.1} parent=11 // pred_fallthru
          _
        // Predicated region
        $region33: #{tpu_custom_call.1} parent=11 // pred_check
          %p364 = pneg %p210
        $region34: #{tpu_custom_call.1} parent=11 // pred_check_branch
          %366 = sbr.rel (%p364) target = $region36
        $region35: #{tpu_custom_call.1} parent=11 // pred_region
          _
        $region36: #{tpu_custom_call.1} parent=11 // pred_fallthru
          _
        // Predicated region
        $region37: #{tpu_custom_call.1} parent=11 // pred_check
          %p367 = pneg %p231
        $region38: #{tpu_custom_call.1} parent=11 // pred_check_branch
          %369 = sbr.rel (%p367) target = $region40
        $region39: #{tpu_custom_call.1} parent=11 // pred_region
          %s371 = ssub.s32 1024, 1024
          %372 = vsyncadd [#allocation12], %s371
          %s373 = sshll.u32 [#allocation11], 4
          %s374 = int_to_ptr.vmem [resolvable:$true] %s373
          %379 = dma.hbm_to_vmem [thread:$0]  %s8, 1024, %s374, [#allocation12], 64, 64, 4
        $region40: #{tpu_custom_call.1} parent=11 // pred_fallthru
          _
        // Predicated region
        $region41: #{tpu_custom_call.1} parent=11 // pred_check
          %p380 = pneg %p252
        $region42: #{tpu_custom_call.1} parent=11 // pred_check_branch
          %382 = sbr.rel (%p380) target = $region44
        $region43: #{tpu_custom_call.1} parent=11 // pred_region
          _
        $region44: #{tpu_custom_call.1} parent=11 // pred_fallthru
          _
      $region12: #{tpu_custom_call.1} parent=5 // pred_fallthru
        _
      %p383 = scmp.lt.s32.totalorder %s32, 2
      // Predicated region
      $region45: #{tpu_custom_call.1} parent=5 // pred_check
        %p384 = pneg %p383
      $region46: #{tpu_custom_call.1} parent=5 // pred_check_branch
        %386 = sbr.rel (%p384) target = $region48
      $region47: #{tpu_custom_call.1} parent=5 // pred_region
        // Predicated region
        $region49: #{tpu_custom_call.1} parent=47 // pred_check
          %p387 = pneg %p52
        $region50: #{tpu_custom_call.1} parent=47 // pred_check_branch
          %389 = sbr.rel (%p387) target = $region52
        $region51: #{tpu_custom_call.1} parent=47 // pred_region
          %s390 = sand.u32 %s42, 1
          %s391 = scalar_lea.sflag [#allocation3], %s390
          %s392 = sand.u32 %s42, 1
          %s393 = smul.addr %s392, 32
          %s394 = scalar_lea.vmem [#allocation2], %s393
          %s395 = smul.u32 4, %s32
          %s397 = ssub.s32 512, 512
          %398 = vsyncadd %s391, %s397
          %s399 = smul.addr %s395, 2
          %s400 = smul.addr %s399, 64
          %s401 = scalar_lea.hbm %s0, %s400
          %s402 = sshll.u32 %s394, 4
          %s403 = int_to_ptr.vmem [resolvable:$true] %s402
          %408 = dma.hbm_to_vmem [thread:$0]  %s401, 512, %s403, %s391, 128, 128, 8
        $region52: #{tpu_custom_call.1} parent=47 // pred_fallthru
          _
        // Predicated region
        $region53: #{tpu_custom_call.1} parent=47 // pred_check
          %p409 = pneg %p78
        $region54: #{tpu_custom_call.1} parent=47 // pred_check_branch
          %411 = sbr.rel (%p409) target = $region56
        $region55: #{tpu_custom_call.1} parent=47 // pred_region
          %s412 = sand.u32 %s32, 1
          %s413 = scalar_lea.sflag [#allocation6], %s412
          %s414 = sand.u32 %s68, 1
          %s415 = smul.addr %s414, 32
          %s416 = scalar_lea.vmem [#allocation5], %s415
          %s417 = smul.u32 4, %s32
          %s419 = ssub.s32 512, 512
          %420 = vsyncadd %s413, %s419
          %s421 = smul.addr %s417, 128
          %s422 = scalar_lea.hbm %s1, %s421
          %s423 = sshll.u32 %s416, 4
          %s424 = int_to_ptr.vmem [resolvable:$true] %s423
          %429 = dma.hbm_to_vmem [thread:$0]  %s422, 512, %s424, %s413, 128, 128, 8
        $region56: #{tpu_custom_call.1} parent=47 // pred_fallthru
          _
      $region48: #{tpu_custom_call.1} parent=5 // pred_fallthru
        _
      %p430 = scmp.le.s32.totalorder 1, %s32
      %p431 = scmp.lt.s32.totalorder %s32, 3
      %p432 = pnand %p430, %p431
      %p433 = pneg %p432
      // Predicated region
      $region57: #{tpu_custom_call.1} parent=5 // pred_check
        _
      $region58: #{tpu_custom_call.1} parent=5 // pred_check_branch
        %435 = sbr.rel (%p432) target = $region60
      $region59: #{tpu_custom_call.1} parent=5 // pred_region
        %s436 = ssub.s32 %s32, 1
        %s437 = sand.u32 %s45, 1
        %s438 = scalar_lea.sflag [#allocation3], %s437
        %s439 = sand.u32 %s45, 1
        %s440 = smul.addr %s439, 32
        %s441 = scalar_lea.vmem [#allocation2], %s440
        // Predicated region
        $region61: #{tpu_custom_call.1} parent=59 // pred_check
          %p442 = pneg %p58
        $region62: #{tpu_custom_call.1} parent=59 // pred_check_branch
          %444 = sbr.rel (%p442) target = $region64
        $region63: #{tpu_custom_call.1} parent=59 // pred_region
          %445 = dma.done %s438, 512
        $region64: #{tpu_custom_call.1} parent=59 // pred_fallthru
          _
        %s446 = sand.u32 %s37, 1
        %s447 = scalar_lea.sflag [#allocation6], %s446
        %s448 = sand.u32 %s71, 1
        %s449 = smul.addr %s448, 32
        %s450 = scalar_lea.vmem [#allocation5], %s449
        // Predicated region
        $region65: #{tpu_custom_call.1} parent=59 // pred_check
          %p451 = pneg %p84
        $region66: #{tpu_custom_call.1} parent=59 // pred_check_branch
          %453 = sbr.rel (%p451) target = $region68
        $region67: #{tpu_custom_call.1} parent=59 // pred_region
          %454 = dma.done %s447, 512
        $region68: #{tpu_custom_call.1} parent=59 // pred_fallthru
          _
        // Predicated region
        $region69: #{tpu_custom_call.1} parent=59 // pred_check
          %p455 = pneg %p105
        $region70: #{tpu_custom_call.1} parent=59 // pred_check_branch
          %457 = sbr.rel (%p455) target = $region72
        $region71: #{tpu_custom_call.1} parent=59 // pred_region
          %458 = dma.done [#allocation6], 2048
        $region72: #{tpu_custom_call.1} parent=59 // pred_fallthru
          _
        // Predicated region
        $region73: #{tpu_custom_call.1} parent=59 // pred_check
          %p459 = pneg %p147
        $region74: #{tpu_custom_call.1} parent=59 // pred_check_branch
          %461 = sbr.rel (%p459) target = $region76
        $region75: #{tpu_custom_call.1} parent=59 // pred_region
          %462 = dma.done [#allocation9], 2048
        $region76: #{tpu_custom_call.1} parent=59 // pred_fallthru
          _
        // Predicated region
        $region77: #{tpu_custom_call.1} parent=59 // pred_check
          %p463 = pneg %p189
        $region78: #{tpu_custom_call.1} parent=59 // pred_check_branch
          %465 = sbr.rel (%p463) target = $region80
        $region79: #{tpu_custom_call.1} parent=59 // pred_region
          %466 = dma.done [#allocation9], 1024
        $region80: #{tpu_custom_call.1} parent=59 // pred_fallthru
          _
        // Predicated region
        $region81: #{tpu_custom_call.1} parent=59 // pred_check
          %p467 = pneg %p231
        $region82: #{tpu_custom_call.1} parent=59 // pred_check_branch
          %469 = sbr.rel (%p467) target = $region84
        $region83: #{tpu_custom_call.1} parent=59 // pred_region
          %470 = dma.done [#allocation12], 1024
        $region84: #{tpu_custom_call.1} parent=59 // pred_fallthru
          _
        %s471 = sand.u32 %s45, 1
        %s472 = scalar_lea.sflag [#allocation3], %s471
        %s473 = sand.u32 %s45, 1
        %s474 = smul.addr %s473, 32
        %s475 = scalar_lea.vmem [#allocation2], %s474
        %p476 = pneg %p58
        %p477 = pneg %p55
        %s478 = sand.u32 %s37, 1
        %s479 = scalar_lea.sflag [#allocation6], %s478
        %s480 = sand.u32 %s71, 1
        %s481 = smul.addr %s480, 32
        %s482 = scalar_lea.vmem [#allocation5], %s481
        %p483 = pneg %p84
        %p484 = pneg %p81
        %p485 = pneg %p105
        %p486 = pneg %p102
        %p487 = pneg %p126
        %p488 = pneg %p123
        %p489 = pneg %p147
        %p490 = pneg %p144
        %p491 = pneg %p168
        %p492 = pneg %p165
        %p493 = pneg %p189
        %p494 = pneg %p186
        %p495 = pneg %p210
        %p496 = pneg %p207
        %p497 = pneg %p231
        %p498 = pneg %p228
        %p499 = pneg %p252
        %p500 = pneg %p249
        %p501 = pneg %p278
        %p502 = pneg %p275
        %s503 = sand.u32 %s265, 1
        %s504 = scalar_lea.sflag [#allocation4], %s503
        %s505 = sand.u32 %s265, 1
        %s506 = smul.addr %s505, 32
        %s507 = scalar_lea.vmem [#allocation13], %s506
        %p508 = pneg %p304
        %p509 = pneg %p301
        %s510 = sand.u32 %s291, 1
        %s511 = scalar_lea.sflag [#allocation15], %s510
        %s512 = sand.u32 %s291, 1
        %s513 = smul.addr %s512, 64
        %s514 = scalar_lea.vmem [#allocation14], %s513
        %s515 = smul.u32 4, %s37
        %s516 = smul.u32 4, %s37
        %s517 = smul.u32 4, %s37
        %s518 = smul.u32 4, %s37
        %v520 = vld [vmem:[%s441] sm:$0xff]
        %v521 = vld [vmem:[%s441 + $0x8] sm:$0xff]
        %v522 = vld [vmem:[%s441 + $0x10] sm:$0xff]
        %v523 = vld [vmem:[%s441 + $0x18] sm:$0xff]
        %v524 = vld [vmem:[#allocation7] sm:$0xf]
        %v525 = vld [vmem:[#allocation7 + $0x4] sm:$0xf]
        %v526 = vld [vmem:[#allocation7 + $0x8] sm:$0xf]
        %v527 = vld [vmem:[#allocation7 + $0xc] sm:$0xf]
        %v528 = vld [vmem:[#allocation7 + $0x10] sm:$0xf]
        %v529 = vld [vmem:[#allocation7 + $0x14] sm:$0xf]
        %v530 = vld [vmem:[#allocation7 + $0x18] sm:$0xf]
        %v531 = vld [vmem:[#allocation7 + $0x1c] sm:$0xf]
        %v532 = vld [vmem:[#allocation7 + $0x20] sm:$0xf]
        %v533 = vld [vmem:[#allocation7 + $0x24] sm:$0xf]
        %v534 = vld [vmem:[#allocation7 + $0x28] sm:$0xf]
        %v535 = vld [vmem:[#allocation7 + $0x2c] sm:$0xf]
        %v536 = vld [vmem:[#allocation7 + $0x30] sm:$0xf]
        %v537 = vld [vmem:[#allocation7 + $0x34] sm:$0xf]
        %v538 = vld [vmem:[#allocation7 + $0x38] sm:$0xf]
        %v539 = vld [vmem:[#allocation7 + $0x3c] sm:$0xf]
        %v540 = vld [vmem:[#allocation7 + $0x40] sm:$0xf]
        %v541 = vld [vmem:[#allocation7 + $0x44] sm:$0xf]
        %v542 = vld [vmem:[#allocation7 + $0x48] sm:$0xf]
        %v543 = vld [vmem:[#allocation7 + $0x4c] sm:$0xf]
        %v544 = vld [vmem:[#allocation7 + $0x50] sm:$0xf]
        %v545 = vld [vmem:[#allocation7 + $0x54] sm:$0xf]
        %v546 = vld [vmem:[#allocation7 + $0x58] sm:$0xf]
        %v547 = vld [vmem:[#allocation7 + $0x5c] sm:$0xf]
        %v548 = vld [vmem:[#allocation7 + $0x60] sm:$0xf]
        %v549 = vld [vmem:[#allocation7 + $0x64] sm:$0xf]
        %v550 = vld [vmem:[#allocation7 + $0x68] sm:$0xf]
        %v551 = vld [vmem:[#allocation7 + $0x6c] sm:$0xf]
        %v552 = vld [vmem:[#allocation7 + $0x70] sm:$0xf]
        %v553 = vld [vmem:[#allocation7 + $0x74] sm:$0xf]
        %v554 = vld [vmem:[#allocation7 + $0x78] sm:$0xf]
        %v555 = vld [vmem:[#allocation7 + $0x7c] sm:$0xf]
        %v556 = vld [vmem:[%s3] sm:$0x1]
        %v558 = vlaneseq
        %v559 = vshrl.u32 %v558, 7
        %v560 = vsub.s32 0, %v559
        %v561 = vrot.slane %v556, %v560
        %v567 = vunpack.c.l.b16 %v520
        %v568 = vunpack.c.h.b16 %v520
        %v569 = vunpack.c.l.b16 %v521
        %v570 = vunpack.c.h.b16 %v521
        %v571 = vunpack.c.l.b16 %v522
        %v572 = vunpack.c.h.b16 %v522
        %v573 = vunpack.c.l.b16 %v523
        %v574 = vunpack.c.h.b16 %v523
        %v575 = vpack.c.b16 %v569, %v567
        %v576 = vpack.c.b16 %v570, %v568
        %v577 = vpack.c.b16 %v573, %v571
        %v578 = vpack.c.b16 %v574, %v572
        %v615 = vunpack.c.l.b16 %v524
        %v616 = vunpack.c.l.b16 %v525
        %v617 = vunpack.c.l.b16 %v526
        %v618 = vunpack.c.l.b16 %v527
        %v619 = vunpack.c.l.b16 %v528
        %v620 = vunpack.c.l.b16 %v529
        %v621 = vunpack.c.l.b16 %v530
        %v622 = vunpack.c.l.b16 %v531
        %v623 = vunpack.c.l.b16 %v532
        %v624 = vunpack.c.l.b16 %v533
        %v625 = vunpack.c.l.b16 %v534
        %v626 = vunpack.c.l.b16 %v535
        %v627 = vunpack.c.l.b16 %v536
        %v628 = vunpack.c.l.b16 %v537
        %v629 = vunpack.c.l.b16 %v538
        %v630 = vunpack.c.l.b16 %v539
        %v631 = vunpack.c.l.b16 %v540
        %v632 = vunpack.c.l.b16 %v541
        %v633 = vunpack.c.l.b16 %v542
        %v634 = vunpack.c.l.b16 %v543
        %v635 = vunpack.c.l.b16 %v544
        %v636 = vunpack.c.l.b16 %v545
        %v637 = vunpack.c.l.b16 %v546
        %v638 = vunpack.c.l.b16 %v547
        %v639 = vunpack.c.l.b16 %v548
        %v640 = vunpack.c.l.b16 %v549
        %v641 = vunpack.c.l.b16 %v550
        %v642 = vunpack.c.l.b16 %v551
        %v643 = vunpack.c.l.b16 %v552
        %v644 = vunpack.c.l.b16 %v553
        %v645 = vunpack.c.l.b16 %v554
        %v646 = vunpack.c.l.b16 %v555
        %v647 = vpack.c.b16 %v616, %v615
        %v648 = vpack.c.b16 %v618, %v617
        %v649 = vpack.c.b16 %v620, %v619
        %v650 = vpack.c.b16 %v622, %v621
        %v651 = vpack.c.b16 %v624, %v623
        %v652 = vpack.c.b16 %v626, %v625
        %v653 = vpack.c.b16 %v628, %v627
        %v654 = vpack.c.b16 %v630, %v629
        %v655 = vpack.c.b16 %v632, %v631
        %v656 = vpack.c.b16 %v634, %v633
        %v657 = vpack.c.b16 %v636, %v635
        %v658 = vpack.c.b16 %v638, %v637
        %v659 = vpack.c.b16 %v640, %v639
        %v660 = vpack.c.b16 %v642, %v641
        %v661 = vpack.c.b16 %v644, %v643
        %v662 = vpack.c.b16 %v646, %v645
        %679 = vmatprep.subr.bf16.mxu0 0
        %680 = vmatpush1.bf16.msra.mxu0 %v654
        %681 = vmatprep.subr.bf16.mxu0 0
        %682 = vmatpush1.bf16.msra.mxu0 %v653
        %683 = vmatprep.subr.bf16.mxu0 0
        %684 = vmatpush1.bf16.msra.mxu0 %v652
        %685 = vmatprep.subr.bf16.mxu0 0
        %686 = vmatpush1.bf16.msra.mxu0 %v651
        %687 = vmatprep.subr.bf16.mxu0 0
        %688 = vmatpush1.bf16.msra.mxu0 %v650
        %689 = vmatprep.subr.bf16.mxu0 0
        %690 = vmatpush1.bf16.msra.mxu0 %v649
        %691 = vmatprep.subr.bf16.mxu0 0
        %692 = vmatpush1.bf16.msra.mxu0 %v648
        %693 = vmatprep.subr.bf16.mxu0 0
        %694 = vmatpush1.bf16.msra.mxu0 %v647
        %695 = vmatprep.subr.bf16.mxu0 0
        %696 = vmatpush2.bf16.msra.mxu0 %v662
        %697 = vmatprep.subr.bf16.mxu0 0
        %698 = vmatpush2.bf16.msra.mxu0 %v661
        %699 = vmatprep.subr.bf16.mxu0 0
        %700 = vmatpush2.bf16.msra.mxu0 %v660
        %701 = vmatprep.subr.bf16.mxu0 0
        %702 = vmatpush2.bf16.msra.mxu0 %v659
        %703 = vmatprep.subr.bf16.mxu0 0
        %704 = vmatpush2.bf16.msra.mxu0 %v658
        %705 = vmatprep.subr.bf16.mxu0 0
        %706 = vmatpush2.bf16.msra.mxu0 %v657
        %707 = vmatprep.subr.bf16.mxu0 0
        %708 = vmatpush2.bf16.msra.mxu0 %v656
        %709 = vmatprep.subr.bf16.mxu0 0
        %710 = vmatpush2.bf16.msra.mxu0 %v655
        %711 = vmatprep.mubr.bf16.mxu0 %v576
        %712 = vmatmul.mubr.bf16.gmra.mxu0 %v575
        %v713 = vpop.f32.mrf.mxu0
        %v714 = vadd.f32 %v561, %v713
        %v715 = vpop.f32.mrf.mxu0
        %v716 = vpop.f32.mrf.mxu0
        %v717 = vadd.f32 %v561, %v716
        %v718 = vpop.f32.mrf.mxu0
        %719 = vmatprep.mubr.bf16.mxu0 %v578
        %720 = vmatmul.mubr.bf16.gmra.mxu0 %v577
        %v721 = vpop.f32.mrf.mxu0
        %v722 = vadd.f32 %v561, %v721
        %v723 = vpop.f32.mrf.mxu0
        %v724 = vpop.f32.mrf.mxu0
        %v725 = vadd.f32 %v561, %v724
        %v726 = vpop.f32.mrf.mxu0
        %727 = vdwg.mxu0
        %v728 = vmax.f32 %v714, 0.0
        %v729 = vmax.f32 %v717, 0.0
        %v730 = vmax.f32 %v722, 0.0
        %v731 = vmax.f32 %v725, 0.0
        %v732 = vpack.c.bf16 %v729, %v728
        %v733 = vpack.c.bf16 %v731, %v730
        %v734 = vld [vmem:[#allocation8] sm:$0xff]
        %v735 = vld [vmem:[#allocation8 + $0x8] sm:$0xff]
        %v736 = vld [vmem:[#allocation8 + $0x10] sm:$0xff]
        %v737 = vld [vmem:[#allocation8 + $0x18] sm:$0xff]
        %v738 = vld [vmem:[#allocation8 + $0x20] sm:$0xff]
        %v739 = vld [vmem:[#allocation8 + $0x28] sm:$0xff]
        %v740 = vld [vmem:[#allocation8 + $0x30] sm:$0xff]
        %v741 = vld [vmem:[#allocation8 + $0x38] sm:$0xff]
        %v742 = vld [vmem:[#allocation8 + $0x40] sm:$0xff]
        %v743 = vld [vmem:[#allocation8 + $0x48] sm:$0xff]
        %v744 = vld [vmem:[#allocation8 + $0x50] sm:$0xff]
        %v745 = vld [vmem:[#allocation8 + $0x58] sm:$0xff]
        %v746 = vld [vmem:[#allocation8 + $0x60] sm:$0xff]
        %v747 = vld [vmem:[#allocation8 + $0x68] sm:$0xff]
        %v748 = vld [vmem:[#allocation8 + $0x70] sm:$0xff]
        %v749 = vld [vmem:[#allocation8 + $0x78] sm:$0xff]
        %v750 = vld [vmem:[%s5] sm:$0x3]
        %v752 = vlaneseq
        %v753 = vshrl.u32 %v752, 7
        %v754 = vsub.s32 0, %v753
        %v755 = vrot.slane %v750, %v754
        %v756 = vlaneseq
        %v757 = vshrl.u32 %v756, 7
        %v758 = vsub.s32 1, %v757
        %v759 = vrot.slane %v750, %v758
        %v778 = vunpack.c.l.b16 %v734
        %v779 = vunpack.c.h.b16 %v734
        %v780 = vunpack.c.l.b16 %v735
        %v781 = vunpack.c.h.b16 %v735
        %v782 = vunpack.c.l.b16 %v736
        %v783 = vunpack.c.h.b16 %v736
        %v784 = vunpack.c.l.b16 %v737
        %v785 = vunpack.c.h.b16 %v737
        %v786 = vunpack.c.l.b16 %v738
        %v787 = vunpack.c.h.b16 %v738
        %v788 = vunpack.c.l.b16 %v739
        %v789 = vunpack.c.h.b16 %v739
        %v790 = vunpack.c.l.b16 %v740
        %v791 = vunpack.c.h.b16 %v740
        %v792 = vunpack.c.l.b16 %v741
        %v793 = vunpack.c.h.b16 %v741
        %v794 = vunpack.c.l.b16 %v742
        %v795 = vunpack.c.h.b16 %v742
        %v796 = vunpack.c.l.b16 %v743
        %v797 = vunpack.c.h.b16 %v743
        %v798 = vunpack.c.l.b16 %v744
        %v799 = vunpack.c.h.b16 %v744
        %v800 = vunpack.c.l.b16 %v745
        %v801 = vunpack.c.h.b16 %v745
        %v802 = vunpack.c.l.b16 %v746
        %v803 = vunpack.c.h.b16 %v746
        %v804 = vunpack.c.l.b16 %v747
        %v805 = vunpack.c.h.b16 %v747
        %v806 = vunpack.c.l.b16 %v748
        %v807 = vunpack.c.h.b16 %v748
        %v808 = vunpack.c.l.b16 %v749
        %v809 = vunpack.c.h.b16 %v749
        %v810 = vpack.c.b16 %v780, %v778
        %v811 = vpack.c.b16 %v781, %v779
        %v812 = vpack.c.b16 %v784, %v782
        %v813 = vpack.c.b16 %v785, %v783
        %v814 = vpack.c.b16 %v788, %v786
        %v815 = vpack.c.b16 %v789, %v787
        %v816 = vpack.c.b16 %v792, %v790
        %v817 = vpack.c.b16 %v793, %v791
        %v818 = vpack.c.b16 %v796, %v794
        %v819 = vpack.c.b16 %v797, %v795
        %v820 = vpack.c.b16 %v800, %v798
        %v821 = vpack.c.b16 %v801, %v799
        %v822 = vpack.c.b16 %v804, %v802
        %v823 = vpack.c.b16 %v805, %v803
        %v824 = vpack.c.b16 %v808, %v806
        %v825 = vpack.c.b16 %v809, %v807
        %842 = vmatprep.subr.bf16.mxu0 %v825
        %843 = vmatpush1.bf16.msra.mxu0 %v824
        %844 = vmatprep.subr.bf16.mxu0 %v823
        %845 = vmatpush1.bf16.msra.mxu0 %v822
        %846 = vmatprep.subr.bf16.mxu0 %v821
        %847 = vmatpush1.bf16.msra.mxu0 %v820
        %848 = vmatprep.subr.bf16.mxu0 %v819
        %849 = vmatpush1.bf16.msra.mxu0 %v818
        %850 = vmatprep.subr.bf16.mxu0 %v817
        %851 = vmatpush1.bf16.msra.mxu0 %v816
        %852 = vmatprep.subr.bf16.mxu0 %v815
        %853 = vmatpush1.bf16.msra.mxu0 %v814
        %854 = vmatprep.subr.bf16.mxu0 %v813
        %855 = vmatpush1.bf16.msra.mxu0 %v812
        %856 = vmatprep.subr.bf16.mxu0 %v811
        %857 = vmatpush1.bf16.msra.mxu0 %v810
        %858 = vmatprep.subr.bf16.mxu0 0
        %859 = vmatpush2.bf16.msra.mxu0 0
        %860 = vmatprep.subr.bf16.mxu0 0
        %861 = vmatpush2.bf16.msra.mxu0 0
        %862 = vmatprep.subr.bf16.mxu0 0
        %863 = vmatpush2.bf16.msra.mxu0 0
        %864 = vmatprep.subr.bf16.mxu0 0
        %865 = vmatpush2.bf16.msra.mxu0 0
        %866 = vmatprep.subr.bf16.mxu0 0
        %867 = vmatpush2.bf16.msra.mxu0 0
        %868 = vmatprep.subr.bf16.mxu0 0
        %869 = vmatpush2.bf16.msra.mxu0 0
        %870 = vmatprep.subr.bf16.mxu0 0
        %871 = vmatpush2.bf16.msra.mxu0 0
        %872 = vmatprep.subr.bf16.mxu0 0
        %873 = vmatpush2.bf16.msra.mxu0 0
        %874 = vmatprep.mubr.bf16.mxu0 0
        %875 = vmatmul.mubr.bf16.gmra.mxu0 %v732
        %v876 = vpop.f32.mrf.mxu0
        %v877 = vadd.f32 %v755, %v876
        %v878 = vpop.f32.mrf.mxu0
        %v879 = vadd.f32 %v759, %v878
        %v880 = vpop.f32.mrf.mxu0
        %v881 = vadd.f32 %v755, %v880
        %v882 = vpop.f32.mrf.mxu0
        %v883 = vadd.f32 %v759, %v882
        %884 = vmatprep.mubr.bf16.mxu0 0
        %885 = vmatmul.mubr.bf16.gmra.mxu0 %v733
        %v886 = vpop.f32.mrf.mxu0
        %v887 = vadd.f32 %v755, %v886
        %v888 = vpop.f32.mrf.mxu0
        %v889 = vadd.f32 %v759, %v888
        %v890 = vpop.f32.mrf.mxu0
        %v891 = vadd.f32 %v755, %v890
        %v892 = vpop.f32.mrf.mxu0
        %v893 = vadd.f32 %v759, %v892
        %894 = vdwg.mxu0
        %895 = vst [vmem:[%s514] sm:$0xff] %v877
        %896 = vst [vmem:[%s514 + $0x8] sm:$0xff] %v879
        %897 = vst [vmem:[%s514 + $0x10] sm:$0xff] %v881
        %898 = vst [vmem:[%s514 + $0x18] sm:$0xff] %v883
        %899 = vst [vmem:[%s514 + $0x20] sm:$0xff] %v887
        %900 = vst [vmem:[%s514 + $0x28] sm:$0xff] %v889
        %901 = vst [vmem:[%s514 + $0x30] sm:$0xff] %v891
        %902 = vst [vmem:[%s514 + $0x38] sm:$0xff] %v893
        %v903 = vld [vmem:[%s450] sm:$0xff]
        %v904 = vld [vmem:[%s450 + $0x8] sm:$0xff]
        %v905 = vld [vmem:[%s450 + $0x10] sm:$0xff]
        %v906 = vld [vmem:[%s450 + $0x18] sm:$0xff]
        %v907 = vmul.f32 %v879, 0.5
        %v908 = vmul.f32 %v883, 0.5
        %v909 = vmul.f32 %v889, 0.5
        %v910 = vmul.f32 %v893, 0.5
        %v911 = vmul.f32 %v907, 1.442695
        %v912 = vpow.pop %v911
        %v913 = vmul.f32 %v908, 1.442695
        %v914 = vpow.pop %v913
        %v915 = vmul.f32 %v909, 1.442695
        %v916 = vpow.pop %v915
        %v917 = vmul.f32 %v910, 1.442695
        %v918 = vpow.pop %v917
        %v919 = vmul.f32 %v903, %v912
        %v920 = vmul.f32 %v904, %v914
        %v921 = vmul.f32 %v905, %v916
        %v922 = vmul.f32 %v906, %v918
        %v923 = vadd.f32 %v877, %v919
        %v924 = vadd.f32 %v881, %v920
        %v925 = vadd.f32 %v887, %v921
        %v926 = vadd.f32 %v891, %v922
        %v927 = vpack.c.bf16 %v924, %v923
        %v928 = vpack.c.bf16 %v926, %v925
        %v929 = vld [vmem:[#allocation10] sm:$0xf]
        %v930 = vld [vmem:[#allocation10 + $0x4] sm:$0xf]
        %v931 = vld [vmem:[#allocation10 + $0x8] sm:$0xf]
        %v932 = vld [vmem:[#allocation10 + $0xc] sm:$0xf]
        %v933 = vld [vmem:[#allocation10 + $0x10] sm:$0xf]
        %v934 = vld [vmem:[#allocation10 + $0x14] sm:$0xf]
        %v935 = vld [vmem:[#allocation10 + $0x18] sm:$0xf]
        %v936 = vld [vmem:[#allocation10 + $0x1c] sm:$0xf]
        %v937 = vld [vmem:[#allocation10 + $0x20] sm:$0xf]
        %v938 = vld [vmem:[#allocation10 + $0x24] sm:$0xf]
        %v939 = vld [vmem:[#allocation10 + $0x28] sm:$0xf]
        %v940 = vld [vmem:[#allocation10 + $0x2c] sm:$0xf]
        %v941 = vld [vmem:[#allocation10 + $0x30] sm:$0xf]
        %v942 = vld [vmem:[#allocation10 + $0x34] sm:$0xf]
        %v943 = vld [vmem:[#allocation10 + $0x38] sm:$0xf]
        %v944 = vld [vmem:[#allocation10 + $0x3c] sm:$0xf]
        %v945 = vld [vmem:[%s7] sm:$0x1]
        %v947 = vlaneseq
        %v948 = vshrl.u32 %v947, 7
        %v949 = vsub.s32 0, %v948
        %v950 = vrot.slane %v945, %v949
        %v968 = vunpack.c.l.b16 %v929
        %v969 = vunpack.c.l.b16 %v930
        %v970 = vunpack.c.l.b16 %v931
        %v971 = vunpack.c.l.b16 %v932
        %v972 = vunpack.c.l.b16 %v933
        %v973 = vunpack.c.l.b16 %v934
        %v974 = vunpack.c.l.b16 %v935
        %v975 = vunpack.c.l.b16 %v936
        %v976 = vunpack.c.l.b16 %v937
        %v977 = vunpack.c.l.b16 %v938
        %v978 = vunpack.c.l.b16 %v939
        %v979 = vunpack.c.l.b16 %v940
        %v980 = vunpack.c.l.b16 %v941
        %v981 = vunpack.c.l.b16 %v942
        %v982 = vunpack.c.l.b16 %v943
        %v983 = vunpack.c.l.b16 %v944
        %v984 = vpack.c.b16 %v969, %v968
        %v985 = vpack.c.b16 %v971, %v970
        %v986 = vpack.c.b16 %v973, %v972
        %v987 = vpack.c.b16 %v975, %v974
        %v988 = vpack.c.b16 %v977, %v976
        %v989 = vpack.c.b16 %v979, %v978
        %v990 = vpack.c.b16 %v981, %v980
        %v991 = vpack.c.b16 %v983, %v982
        %1000 = vmatprep.subr.bf16.mxu0 0
        %1001 = vmatpush1.bf16.msra.mxu0 %v991
        %1002 = vmatprep.subr.bf16.mxu0 0
        %1003 = vmatpush1.bf16.msra.mxu0 %v990
        %1004 = vmatprep.subr.bf16.mxu0 0
        %1005 = vmatpush1.bf16.msra.mxu0 %v989
        %1006 = vmatprep.subr.bf16.mxu0 0
        %1007 = vmatpush1.bf16.msra.mxu0 %v988
        %1008 = vmatprep.subr.bf16.mxu0 0
        %1009 = vmatpush1.bf16.msra.mxu0 %v987
        %1010 = vmatprep.subr.bf16.mxu0 0
        %1011 = vmatpush1.bf16.msra.mxu0 %v986
        %1012 = vmatprep.subr.bf16.mxu0 0
        %1013 = vmatpush1.bf16.msra.mxu0 %v985
        %1014 = vmatprep.subr.bf16.mxu0 0
        %1015 = vmatpush1.bf16.msra.mxu0 %v984
        %1016 = vmatprep.subr.bf16.mxu0 0
        %1017 = vmatpush2.bf16.msra.mxu0 0
        %1018 = vmatprep.subr.bf16.mxu0 0
        %1019 = vmatpush2.bf16.msra.mxu0 0
        %1020 = vmatprep.subr.bf16.mxu0 0
        %1021 = vmatpush2.bf16.msra.mxu0 0
        %1022 = vmatprep.subr.bf16.mxu0 0
        %1023 = vmatpush2.bf16.msra.mxu0 0
        %1024 = vmatprep.subr.bf16.mxu0 0
        %1025 = vmatpush2.bf16.msra.mxu0 0
        %1026 = vmatprep.subr.bf16.mxu0 0
        %1027 = vmatpush2.bf16.msra.mxu0 0
        %1028 = vmatprep.subr.bf16.mxu0 0
        %1029 = vmatpush2.bf16.msra.mxu0 0
        %1030 = vmatprep.subr.bf16.mxu0 0
        %1031 = vmatpush2.bf16.msra.mxu0 0
        %1032 = vmatprep.mubr.bf16.mxu0 0
        %1033 = vmatmul.mubr.bf16.gmra.mxu0 %v927
        %v1034 = vpop.f32.mrf.mxu0
        %v1035 = vadd.f32 %v950, %v1034
        %v1036 = vpop.f32.mrf.mxu0
        %v1037 = vpop.f32.mrf.mxu0
        %v1038 = vadd.f32 %v950, %v1037
        %v1039 = vpop.f32.mrf.mxu0
        %1040 = vmatprep.mubr.bf16.mxu0 0
        %1041 = vmatmul.mubr.bf16.gmra.mxu0 %v928
        %v1042 = vpop.f32.mrf.mxu0
        %v1043 = vadd.f32 %v950, %v1042
        %v1044 = vpop.f32.mrf.mxu0
        %v1045 = vpop.f32.mrf.mxu0
        %v1046 = vadd.f32 %v950, %v1045
        %v1047 = vpop.f32.mrf.mxu0
        %1048 = vdwg.mxu0
        %v1049 = vmax.f32 %v1035, 0.0
        %v1050 = vmax.f32 %v1038, 0.0
        %v1051 = vmax.f32 %v1043, 0.0
        %v1052 = vmax.f32 %v1046, 0.0
        %v1053 = vpack.c.bf16 %v1050, %v1049
        %v1054 = vpack.c.bf16 %v1052, %v1051
        %v1055 = vld [vmem:[#allocation11] sm:$0xf]
        %v1056 = vld [vmem:[#allocation11 + $0x4] sm:$0xf]
        %v1057 = vld [vmem:[#allocation11 + $0x8] sm:$0xf]
        %v1058 = vld [vmem:[#allocation11 + $0xc] sm:$0xf]
        %v1059 = vld [vmem:[#allocation11 + $0x10] sm:$0xf]
        %v1060 = vld [vmem:[#allocation11 + $0x14] sm:$0xf]
        %v1061 = vld [vmem:[#allocation11 + $0x18] sm:$0xf]
        %v1062 = vld [vmem:[#allocation11 + $0x1c] sm:$0xf]
        %v1063 = vld [vmem:[#allocation11 + $0x20] sm:$0xf]
        %v1064 = vld [vmem:[#allocation11 + $0x24] sm:$0xf]
        %v1065 = vld [vmem:[#allocation11 + $0x28] sm:$0xf]
        %v1066 = vld [vmem:[#allocation11 + $0x2c] sm:$0xf]
        %v1067 = vld [vmem:[#allocation11 + $0x30] sm:$0xf]
        %v1068 = vld [vmem:[#allocation11 + $0x34] sm:$0xf]
        %v1069 = vld [vmem:[#allocation11 + $0x38] sm:$0xf]
        %v1070 = vld [vmem:[#allocation11 + $0x3c] sm:$0xf]
        %v1071 = vld [vmem:[%s9] sm:$0x1]
        %v1073 = vlaneseq
        %v1074 = vshrl.u32 %v1073, 7
        %v1075 = vsub.s32 0, %v1074
        %v1076 = vrot.slane %v1071, %v1075
        %v1094 = vunpack.c.l.b16 %v1055
        %v1095 = vunpack.c.l.b16 %v1056
        %v1096 = vunpack.c.l.b16 %v1057
        %v1097 = vunpack.c.l.b16 %v1058
        %v1098 = vunpack.c.l.b16 %v1059
        %v1099 = vunpack.c.l.b16 %v1060
        %v1100 = vunpack.c.l.b16 %v1061
        %v1101 = vunpack.c.l.b16 %v1062
        %v1102 = vunpack.c.l.b16 %v1063
        %v1103 = vunpack.c.l.b16 %v1064
        %v1104 = vunpack.c.l.b16 %v1065
        %v1105 = vunpack.c.l.b16 %v1066
        %v1106 = vunpack.c.l.b16 %v1067
        %v1107 = vunpack.c.l.b16 %v1068
        %v1108 = vunpack.c.l.b16 %v1069
        %v1109 = vunpack.c.l.b16 %v1070
        %v1110 = vpack.c.b16 %v1095, %v1094
        %v1111 = vpack.c.b16 %v1097, %v1096
        %v1112 = vpack.c.b16 %v1099, %v1098
        %v1113 = vpack.c.b16 %v1101, %v1100
        %v1114 = vpack.c.b16 %v1103, %v1102
        %v1115 = vpack.c.b16 %v1105, %v1104
        %v1116 = vpack.c.b16 %v1107, %v1106
        %v1117 = vpack.c.b16 %v1109, %v1108
        %1126 = vmatprep.subr.bf16.mxu0 0
        %1127 = vmatpush1.bf16.msra.mxu0 %v1117
        %1128 = vmatprep.subr.bf16.mxu0 0
        %1129 = vmatpush1.bf16.msra.mxu0 %v1116
        %1130 = vmatprep.subr.bf16.mxu0 0
        %1131 = vmatpush1.bf16.msra.mxu0 %v1115
        %1132 = vmatprep.subr.bf16.mxu0 0
        %1133 = vmatpush1.bf16.msra.mxu0 %v1114
        %1134 = vmatprep.subr.bf16.mxu0 0
        %1135 = vmatpush1.bf16.msra.mxu0 %v1113
        %1136 = vmatprep.subr.bf16.mxu0 0
        %1137 = vmatpush1.bf16.msra.mxu0 %v1112
        %1138 = vmatprep.subr.bf16.mxu0 0
        %1139 = vmatpush1.bf16.msra.mxu0 %v1111
        %1140 = vmatprep.subr.bf16.mxu0 0
        %1141 = vmatpush1.bf16.msra.mxu0 %v1110
        %1142 = vmatprep.subr.bf16.mxu0 0
        %1143 = vmatpush2.bf16.msra.mxu0 0
        %1144 = vmatprep.subr.bf16.mxu0 0
        %1145 = vmatpush2.bf16.msra.mxu0 0
        %1146 = vmatprep.subr.bf16.mxu0 0
        %1147 = vmatpush2.bf16.msra.mxu0 0
        %1148 = vmatprep.subr.bf16.mxu0 0
        %1149 = vmatpush2.bf16.msra.mxu0 0
        %1150 = vmatprep.subr.bf16.mxu0 0
        %1151 = vmatpush2.bf16.msra.mxu0 0
        %1152 = vmatprep.subr.bf16.mxu0 0
        %1153 = vmatpush2.bf16.msra.mxu0 0
        %1154 = vmatprep.subr.bf16.mxu0 0
        %1155 = vmatpush2.bf16.msra.mxu0 0
        %1156 = vmatprep.subr.bf16.mxu0 0
        %1157 = vmatpush2.bf16.msra.mxu0 0
        %1158 = vmatprep.mubr.bf16.mxu0 0
        %1159 = vmatmul.mubr.bf16.gmra.mxu0 %v1053
        %v1160 = vpop.f32.mrf.mxu0
        %v1161 = vadd.f32 %v1076, %v1160
        %v1162 = vpop.f32.mrf.mxu0
        %v1163 = vpop.f32.mrf.mxu0
        %v1164 = vadd.f32 %v1076, %v1163
        %v1165 = vpop.f32.mrf.mxu0
        %1166 = vmatprep.mubr.bf16.mxu0 0
        %1167 = vmatmul.mubr.bf16.gmra.mxu0 %v1054
        %v1168 = vpop.f32.mrf.mxu0
        %v1169 = vadd.f32 %v1076, %v1168
        %v1170 = vpop.f32.mrf.mxu0
        %v1171 = vpop.f32.mrf.mxu0
        %v1172 = vadd.f32 %v1076, %v1171
        %v1173 = vpop.f32.mrf.mxu0
        %1174 = vdwg.mxu0
        %1175 = vmax.xlane.f32.xlu0 %v1161
        %v1176 = vpop.xlane.xlu0 %1175
        %1177 = vmax.xlane.f32.xlu0 %v1164
        %v1178 = vpop.xlane.xlu0 %1177
        %1179 = vmax.xlane.f32.xlu0 %v1169
        %v1180 = vpop.xlane.xlu0 %1179
        %1181 = vmax.xlane.f32.xlu0 %v1172
        %v1182 = vpop.xlane.xlu0 %1181
        %v1183 = vsub.f32 %v1161, %v1176
        %v1184 = vsub.f32 %v1164, %v1178
        %v1185 = vsub.f32 %v1169, %v1180
        %v1186 = vsub.f32 %v1172, %v1182
        %v1187 = vmul.f32 %v1183, 1.442695
        %v1188 = vpow.pop %v1187
        %v1189 = vmul.f32 %v1184, 1.442695
        %v1190 = vpow.pop %v1189
        %v1191 = vmul.f32 %v1185, 1.442695
        %v1192 = vpow.pop %v1191
        %v1193 = vmul.f32 %v1186, 1.442695
        %v1194 = vpow.pop %v1193
        %1195 = vadd.xlane.f32.xlu0 %v1188
        %v1196 = vpop.xlane.xlu0 %1195
        %1197 = vadd.xlane.f32.xlu0 %v1190
        %v1198 = vpop.xlane.xlu0 %1197
        %1199 = vadd.xlane.f32.xlu0 %v1192
        %v1200 = vpop.xlane.xlu0 %1199
        %1201 = vadd.xlane.f32.xlu0 %v1194
        %v1202 = vpop.xlane.xlu0 %1201
        %v1203 = vrcp.pop %v1196
        %v1204 = vrcp.pop %v1198
        %v1205 = vrcp.pop %v1200
        %v1206 = vrcp.pop %v1202
        %v1207 = vmul.f32 %v1188, %v1203
        %v1208 = vmul.f32 %v1190, %v1204
        %v1209 = vmul.f32 %v1192, %v1205
        %v1210 = vmul.f32 %v1194, %v1206
        %1211 = vst [vmem:[%s507] sm:$0xff] %v1207
        %1212 = vst [vmem:[%s507 + $0x8] sm:$0xff] %v1208
        %1213 = vst [vmem:[%s507 + $0x10] sm:$0xff] %v1209
        %1214 = vst [vmem:[%s507 + $0x18] sm:$0xff] %v1210
        %s1215 = sand.u32 %s265, 1
        %s1216 = scalar_lea.sflag [#allocation4], %s1215
        %s1217 = sand.u32 %s265, 1
        %s1218 = smul.addr %s1217, 32
        %s1219 = scalar_lea.vmem [#allocation13], %s1218
        %s1220 = sand.u32 %s291, 1
        %s1221 = scalar_lea.sflag [#allocation15], %s1220
        %s1222 = sand.u32 %s291, 1
        %s1223 = smul.addr %s1222, 64
        %s1224 = scalar_lea.vmem [#allocation14], %s1223
        // Predicated region
        $region85: #{tpu_custom_call.1} parent=59 // pred_check
          %p1225 = pneg %p275
        $region86: #{tpu_custom_call.1} parent=59 // pred_check_branch
          %1227 = sbr.rel (%p1225) target = $region88
        $region87: #{tpu_custom_call.1} parent=59 // pred_region
          %s1228 = smul.u32 4, %s37
          %s1230 = ssub.s32 512, 512
          %1231 = vsyncadd %s1216, %s1230
          %s1232 = smul.addr %s1228, 128
          %s1233 = scalar_lea.hbm %s10, %s1232
          %s1234 = sshll.u32 %s1219, 4
          %s1235 = int_to_ptr.vmem [resolvable:$true] %s1234
          %1240 = dma.vmem_to_hbm [thread:$0]  %s1235, 512, %s1233, %s1216, 128, 128, 8
        $region88: #{tpu_custom_call.1} parent=59 // pred_fallthru
          _
        // Predicated region
        $region89: #{tpu_custom_call.1} parent=59 // pred_check
          %p1241 = pneg %p301
        $region90: #{tpu_custom_call.1} parent=59 // pred_check_branch
          %1243 = sbr.rel (%p1241) target = $region92
        $region91: #{tpu_custom_call.1} parent=59 // pred_region
          %s1244 = smul.u32 4, %s37
          %s1246 = ssub.s32 1024, 1024
          %1247 = vsyncadd %s1221, %s1246
          %s1248 = smul.addr %s1244, 2
          %s1249 = smul.addr %s1248, 128
          %s1250 = scalar_lea.hbm %s11, %s1249
          %s1251 = sshll.u32 %s1224, 4
          %s1252 = int_to_ptr.vmem [resolvable:$true] %s1251
          %1257 = dma.vmem_to_hbm [thread:$0]  %s1252, 1024, %s1250, %s1221, 256, 256, 16
        $region92: #{tpu_custom_call.1} parent=59 // pred_fallthru
          _
      $region60: #{tpu_custom_call.1} parent=5 // pred_fallthru
        _
      %p1258 = scmp.le.s32.totalorder 2, %s32
      // Predicated region
      $region93: #{tpu_custom_call.1} parent=5 // pred_check
        %p1259 = pneg %p1258
      $region94: #{tpu_custom_call.1} parent=5 // pred_check_branch
        %1261 = sbr.rel (%p1259) target = $region96
      $region95: #{tpu_custom_call.1} parent=5 // pred_region
        %s1262 = ssub.s32 %s32, 2
        // Predicated region
        $region97: #{tpu_custom_call.1} parent=95 // pred_check
          %p1263 = pneg %p281
        $region98: #{tpu_custom_call.1} parent=95 // pred_check_branch
          %1265 = sbr.rel (%p1263) target = $region100
        $region99: #{tpu_custom_call.1} parent=95 // pred_region
          %s1266 = sand.u32 %s266, 1
          %s1267 = scalar_lea.sflag [#allocation4], %s1266
          %s1268 = sand.u32 %s266, 1
          %s1269 = smul.addr %s1268, 32
          %s1270 = scalar_lea.vmem [#allocation13], %s1269
          %1271 = dma.done %s1267, 512
        $region100: #{tpu_custom_call.1} parent=95 // pred_fallthru
          _
        // Predicated region
        $region101: #{tpu_custom_call.1} parent=95 // pred_check
          %p1272 = pneg %p307
        $region102: #{tpu_custom_call.1} parent=95 // pred_check_branch
          %1274 = sbr.rel (%p1272) target = $region104
        $region103: #{tpu_custom_call.1} parent=95 // pred_region
          %s1275 = sand.u32 %s292, 1
          %s1276 = scalar_lea.sflag [#allocation15], %s1275
          %s1277 = sand.u32 %s292, 1
          %s1278 = smul.addr %s1277, 64
          %s1279 = scalar_lea.vmem [#allocation14], %s1278
          %1280 = dma.done %s1276, 1024
        $region104: #{tpu_custom_call.1} parent=95 // pred_fallthru
          _
      $region96: #{tpu_custom_call.1} parent=5 // pred_fallthru
        _
    $region6: #{tpu_custom_call.1} parent=1 // loop_footer
      %s36 = sadd.s32 1, %s32
    $region7: #{tpu_custom_call.1} parent=1 // loop_footer_branch
      %31 = sbr.rel target = $region3
    $region8: #{tpu_custom_call.1} parent=1 // loop_exit
      _
    %1281 = vsyncpa [#allocation3], 1
    %s1282 = scalar_lea.sflag [#allocation3], 1
    %1283 = vsyncpa %s1282, 1
    %1284 = vsyncpa [#allocation6], 1
    %s1285 = scalar_lea.sflag [#allocation6], 1
    %1286 = vsyncpa %s1285, 1
    %1287 = vsyncpa [#allocation9], 1
    %1288 = vsyncpa [#allocation12], 1
    %1289 = vsyncpa [#allocation4], 1
    %s1290 = scalar_lea.sflag [#allocation4], 1
    %1291 = vsyncpa %s1290, 1
    %1292 = vsyncpa [#allocation15], 1
    %s1293 = scalar_lea.sflag [#allocation15], 1
    %1294 = vsyncpa %s1293, 1

// kernel: tpu_custom_call.1
$region0: #{tpu_custom_call.1}
  #allocation0 [shape = 'u32[]', space=smem, size = 0x4, offset = 0x4, fixed_abs, tag = 'smem constant byte address 0x4 - core index']
  #allocation1 [shape = 'u32[144,128]{1,0:T(1,128)}', space=vmem, size = 0x12000, scoped, tag = 'internal scratch']
  %s0 = inlined_call_operand.hbm [shape: bf16[64,256], index: 0, kind: input, shape index: {}]
  %s1 = inlined_call_operand.hbm [shape: f32[64,128], index: 1, kind: input, shape index: {}]
  %s2 = inlined_call_operand.hbm [shape: bf16[256,128], index: 2, kind: input, shape index: {}]
  %s3 = inlined_call_operand.vmem [shape: f32[1,128], index: 3, kind: input, shape index: {}]
  %s4 = inlined_call_operand.hbm [shape: bf16[128,256], index: 4, kind: input, shape index: {}]
  %s5 = inlined_call_operand.vmem [shape: f32[1,256], index: 5, kind: input, shape index: {}]
  %s6 = inlined_call_operand.hbm [shape: bf16[128,128], index: 6, kind: input, shape index: {}]
  %s7 = inlined_call_operand.vmem [shape: f32[1,128], index: 7, kind: input, shape index: {}]
  %s8 = inlined_call_operand.hbm [shape: bf16[128,128], index: 8, kind: input, shape index: {}]
  %s9 = inlined_call_operand.vmem [shape: f32[1,128], index: 9, kind: input, shape index: {}]
  %s10 = inlined_call_operand.hbm [shape: f32[64,128], index: 10, kind: output, shape index: {0}]
  %s11 = inlined_call_operand.hbm [shape: f32[64,256], index: 11, kind: output, shape index: {1}]
  %12 = xla_tuple %s10, %s11
  %s13 = sld [smem:[#allocation0]]
  $region105: #{tpu_custom_call.1} parent=0
    _
  %s15 = ssub.s32 1, %s13
  %s16 = scalar_select 0, %s15, %s13
  $region1: #{tpu_custom_call.1} parent=0
    #allocation2 [shape = 'u8[32768]{0}', space=vmem, size = 0x8000, scoped, tag = 'input window, operand 0']
    #allocation3 [shape = 's32[2]{0}', space=sflag, size = 0x8, scoped, tag = 'scoped memory for tpu_custom_call.1']
    #allocation4 [shape = 's32[2]{0}', space=sflag, size = 0x8, scoped, tag = 'scoped memory for tpu_custom_call.1']
    #allocation5 [shape = 'u8[32768]{0}', space=vmem, size = 0x8000, scoped, tag = 'input window, operand 1']
    #allocation6 [shape = 's32[2]{0}', space=sflag, size = 0x8, scoped, tag = 'scoped memory for tpu_custom_call.1']
    #allocation7 [shape = 'u8[65536]{0}', space=vmem, size = 0x10000, scoped, tag = 'input window, operand 2, single buffered']
    #allocation8 [shape = 'u8[65536]{0}', space=vmem, size = 0x10000, scoped, tag = 'input window, operand 4, single buffered']
    #allocation9 [shape = 's32[1]{0}', space=sflag, size = 0x4, scoped, tag = 'scoped memory for tpu_custom_call.1']
    #allocation10 [shape = 'u8[32768]{0}', space=vmem, size = 0x8000, scoped, tag = 'input window, operand 6, single buffered']
    #allocation11 [shape = 'u8[32768]{0}', space=vmem, size = 0x8000, scoped, tag = 'input window, operand 8, single buffered']
    #allocation12 [shape = 's32[1]{0}', space=sflag, size = 0x4, scoped, tag = 'scoped memory for tpu_custom_call.1']
    #allocation13 [shape = 'u8[32768]{0}', space=vmem, size = 0x8000, scoped, tag = 'output window, operand 0']
    #allocation14 [shape = 'u8[65536]{0}', space=vmem, size = 0x10000, scoped, tag = 'output window, operand 1']
    #allocation15 [shape = 's32[2]{0}', space=sflag, size = 0x8, scoped, tag = 'scoped memory for tpu_custom_call.1']
    %17 = vsyncpa [#allocation3], 0
    %s18 = scalar_lea.sflag [#allocation3], 1
    %19 = vsyncpa %s18, 0
    %20 = vsyncpa [#allocation6], 0
    %s21 = scalar_lea.sflag [#allocation6], 1
    %22 = vsyncpa %s21, 0
    %23 = vsyncpa [#allocation9], 0
    %24 = vsyncpa [#allocation12], 0
    %25 = vsyncpa [#allocation4], 0
    %s26 = scalar_lea.sflag [#allocation4], 1
    %27 = vsyncpa %s26, 0
    %28 = vsyncpa [#allocation15], 0
    %s29 = scalar_lea.sflag [#allocation15], 1
    %30 = vsyncpa %s29, 0
    loop: start=0, step=1, limit=4
    $region2: #{tpu_custom_call.1} parent=1 // loop_pre_header
      _
    $region3: #{tpu_custom_call.1} parent=1 // loop_header
      %s32 = sphi 0, %s36
      %p33 = scmp.ge.s32.totalorder %s32, 4
      %s42 = sphi 0, %s44
      %s45 = sphi 0, %s42
      %s46 = sphi 0, %s45
      %s62 = sphi 0, %s46
      %s68 = sphi 0, %s70
      %s71 = sphi 0, %s68
      %s72 = sphi 0, %s71
      %s88 = sphi 0, %s72
      %s92 = sphi 0, %s92
      %s94 = sphi 0, %s92
      %s95 = sphi 0, %s94
      %s109 = sphi 0, %s95
      %s113 = sphi 0, %s113
      %s115 = sphi 0, %s113
      %s116 = sphi 0, %s115
      %s130 = sphi 0, %s116
      %s134 = sphi 0, %s134
      %s136 = sphi 0, %s134
      %s137 = sphi 0, %s136
      %s151 = sphi 0, %s137
      %s155 = sphi 0, %s155
      %s157 = sphi 0, %s155
      %s158 = sphi 0, %s157
      %s172 = sphi 0, %s158
      %s176 = sphi 0, %s176
      %s178 = sphi 0, %s176
      %s179 = sphi 0, %s178
      %s193 = sphi 0, %s179
      %s197 = sphi 0, %s197
      %s199 = sphi 0, %s197
      %s200 = sphi 0, %s199
      %s214 = sphi 0, %s200
      %s218 = sphi 0, %s218
      %s220 = sphi 0, %s218
      %s221 = sphi 0, %s220
      %s235 = sphi 0, %s221
      %s239 = sphi 0, %s239
      %s241 = sphi 0, %s239
      %s242 = sphi 0, %s241
      %s256 = sphi 0, %s242
      %s262 = sphi 0, %s264
      %s265 = sphi 0, %s262
      %s266 = sphi 0, %s265
      %s282 = sphi 0, %s266
      %s288 = sphi 0, %s290
      %s291 = sphi 0, %s288
      %s292 = sphi 0, %s291
      %s308 = sphi 0, %s292
    $region4: #{tpu_custom_call.1} parent=1 // loop_header_branch
      %35 = sbr.rel (%p33) target = $region8
    $region5: #{tpu_custom_call.1} parent=1 // loop_body
      %s37 = ssub.s32 %s32, 1
      %s38 = ssub.s32 %s32, 2
      %s39 = sadd.s32 %s32, 1
      %s40 = ssub.s32 %s32, %s39
      %p41 = scmp.eq.s32.totalorder %s40, 0
      %s43 = sadd.s32 %s42, 1
      %s44 = scalar_select %p41, %s42, %s43
      %p47 = pneg %p41
      %p48 = scmp.eq.s32.totalorder %s32, 1
      %p49 = por %p47, %p48
      %p50 = scmp.ne.s32.totalorder %s42, %s45
      %p51 = scmp.eq.s32.totalorder %s32, 0
      %p52 = por %p50, %p51
      %p53 = scmp.ne.s32.totalorder %s42, %s45
      %p54 = scmp.eq.s32.totalorder %s37, 1
      %p55 = por %p53, %p54
      %p56 = scmp.ne.s32.totalorder %s45, %s46
      %p57 = scmp.eq.s32.totalorder %s37, 0
      %p58 = por %p56, %p57
      %p59 = scmp.ne.s32.totalorder %s45, %s46
      %p60 = scmp.eq.s32.totalorder %s38, 1
      %p61 = por %p59, %p60
      %p63 = scmp.ne.s32.totalorder %s46, %s62
      %p64 = scmp.eq.s32.totalorder %s38, 0
      %p65 = por %p63, %p64
      %s66 = ssub.s32 %s32, %s39
      %p67 = scmp.eq.s32.totalorder %s66, 0
      %s69 = sadd.s32 %s68, 1
      %s70 = scalar_select %p67, %s68, %s69
      %p73 = pneg %p67
      %p74 = scmp.eq.s32.totalorder %s32, 1
      %p75 = por %p73, %p74
      %p76 = scmp.ne.s32.totalorder %s68, %s71
      %p77 = scmp.eq.s32.totalorder %s32, 0
      %p78 = por %p76, %p77
      %p79 = scmp.ne.s32.totalorder %s68, %s71
      %p80 = scmp.eq.s32.totalorder %s37, 1
      %p81 = por %p79, %p80
      %p82 = scmp.ne.s32.totalorder %s71, %s72
      %p83 = scmp.eq.s32.totalorder %s37, 0
      %p84 = por %p82, %p83
      %p85 = scmp.ne.s32.totalorder %s71, %s72
      %p86 = scmp.eq.s32.totalorder %s38, 1
      %p87 = por %p85, %p86
      %p89 = scmp.ne.s32.totalorder %s72, %s88
      %p90 = scmp.eq.s32.totalorder %s38, 0
      %p91 = por %p89, %p90
      %s93 = sadd.s32 %s92, 1
      %p96 = scmp.eq.s32.totalorder %s32, 1
      %p97 = scmp.ne.s32.totalorder %s92, %s94
      %p98 = scmp.eq.s32.totalorder %s32, 0
      %p99 = por %p97, %p98
      %p100 = scmp.ne.s32.totalorder %s92, %s94
      %p101 = scmp.eq.s32.totalorder %s37, 1
      %p102 = por %p100, %p101
      %p103 = scmp.ne.s32.totalorder %s94, %s95
      %p104 = scmp.eq.s32.totalorder %s37, 0
      %p105 = por %p103, %p104
      %p106 = scmp.ne.s32.totalorder %s94, %s95
      %p107 = scmp.eq.s32.totalorder %s38, 1
      %p108 = por %p106, %p107
      %p110 = scmp.ne.s32.totalorder %s95, %s109
      %p111 = scmp.eq.s32.totalorder %s38, 0
      %p112 = por %p110, %p111
      %s114 = sadd.s32 %s113, 1
      %p117 = scmp.eq.s32.totalorder %s32, 1
      %p118 = scmp.ne.s32.totalorder %s113, %s115
      %p119 = scmp.eq.s32.totalorder %s32, 0
      %p120 = por %p118, %p119
      %p121 = scmp.ne.s32.totalorder %s113, %s115
      %p122 = scmp.eq.s32.totalorder %s37, 1
      %p123 = por %p121, %p122
      %p124 = scmp.ne.s32.totalorder %s115, %s116
      %p125 = scmp.eq.s32.totalorder %s37, 0
      %p126 = por %p124, %p125
      %p127 = scmp.ne.s32.totalorder %s115, %s116
      %p128 = scmp.eq.s32.totalorder %s38, 1
      %p129 = por %p127, %p128
      %p131 = scmp.ne.s32.totalorder %s116, %s130
      %p132 = scmp.eq.s32.totalorder %s38, 0
      %p133 = por %p131, %p132
      %s135 = sadd.s32 %s134, 1
      %p138 = scmp.eq.s32.totalorder %s32, 1
      %p139 = scmp.ne.s32.totalorder %s134, %s136
      %p140 = scmp.eq.s32.totalorder %s32, 0
      %p141 = por %p139, %p140
      %p142 = scmp.ne.s32.totalorder %s134, %s136
      %p143 = scmp.eq.s32.totalorder %s37, 1
      %p144 = por %p142, %p143
      %p145 = scmp.ne.s32.totalorder %s136, %s137
      %p146 = scmp.eq.s32.totalorder %s37, 0
      %p147 = por %p145, %p146
      %p148 = scmp.ne.s32.totalorder %s136, %s137
      %p149 = scmp.eq.s32.totalorder %s38, 1
      %p150 = por %p148, %p149
      %p152 = scmp.ne.s32.totalorder %s137, %s151
      %p153 = scmp.eq.s32.totalorder %s38, 0
      %p154 = por %p152, %p153
      %s156 = sadd.s32 %s155, 1
      %p159 = scmp.eq.s32.totalorder %s32, 1
      %p160 = scmp.ne.s32.totalorder %s155, %s157
      %p161 = scmp.eq.s32.totalorder %s32, 0
      %p162 = por %p160, %p161
      %p163 = scmp.ne.s32.totalorder %s155, %s157
      %p164 = scmp.eq.s32.totalorder %s37, 1
      %p165 = por %p163, %p164
      %p166 = scmp.ne.s32.totalorder %s157, %s158
      %p167 = scmp.eq.s32.totalorder %s37, 0
      %p168 = por %p166, %p167
      %p169 = scmp.ne.s32.totalorder %s157, %s158
      %p170 = scmp.eq.s32.totalorder %s38, 1
      %p171 = por %p169, %p170
      %p173 = scmp.ne.s32.totalorder %s158, %s172
      %p174 = scmp.eq.s32.totalorder %s38, 0
      %p175 = por %p173, %p174
      %s177 = sadd.s32 %s176, 1
      %p180 = scmp.eq.s32.totalorder %s32, 1
      %p181 = scmp.ne.s32.totalorder %s176, %s178
      %p182 = scmp.eq.s32.totalorder %s32, 0
      %p183 = por %p181, %p182
      %p184 = scmp.ne.s32.totalorder %s176, %s178
      %p185 = scmp.eq.s32.totalorder %s37, 1
      %p186 = por %p184, %p185
      %p187 = scmp.ne.s32.totalorder %s178, %s179
      %p188 = scmp.eq.s32.totalorder %s37, 0
      %p189 = por %p187, %p188
      %p190 = scmp.ne.s32.totalorder %s178, %s179
      %p191 = scmp.eq.s32.totalorder %s38, 1
      %p192 = por %p190, %p191
      %p194 = scmp.ne.s32.totalorder %s179, %s193
      %p195 = scmp.eq.s32.totalorder %s38, 0
      %p196 = por %p194, %p195
      %s198 = sadd.s32 %s197, 1
      %p201 = scmp.eq.s32.totalorder %s32, 1
      %p202 = scmp.ne.s32.totalorder %s197, %s199
      %p203 = scmp.eq.s32.totalorder %s32, 0
      %p204 = por %p202, %p203
      %p205 = scmp.ne.s32.totalorder %s197, %s199
      %p206 = scmp.eq.s32.totalorder %s37, 1
      %p207 = por %p205, %p206
      %p208 = scmp.ne.s32.totalorder %s199, %s200
      %p209 = scmp.eq.s32.totalorder %s37, 0
      %p210 = por %p208, %p209
      %p211 = scmp.ne.s32.totalorder %s199, %s200
      %p212 = scmp.eq.s32.totalorder %s38, 1
      %p213 = por %p211, %p212
      %p215 = scmp.ne.s32.totalorder %s200, %s214
      %p216 = scmp.eq.s32.totalorder %s38, 0
      %p217 = por %p215, %p216
      %s219 = sadd.s32 %s218, 1
      %p222 = scmp.eq.s32.totalorder %s32, 1
      %p223 = scmp.ne.s32.totalorder %s218, %s220
      %p224 = scmp.eq.s32.totalorder %s32, 0
      %p225 = por %p223, %p224
      %p226 = scmp.ne.s32.totalorder %s218, %s220
      %p227 = scmp.eq.s32.totalorder %s37, 1
      %p228 = por %p226, %p227
      %p229 = scmp.ne.s32.totalorder %s220, %s221
      %p230 = scmp.eq.s32.totalorder %s37, 0
      %p231 = por %p229, %p230
      %p232 = scmp.ne.s32.totalorder %s220, %s221
      %p233 = scmp.eq.s32.totalorder %s38, 1
      %p234 = por %p232, %p233
      %p236 = scmp.ne.s32.totalorder %s221, %s235
      %p237 = scmp.eq.s32.totalorder %s38, 0
      %p238 = por %p236, %p237
      %s240 = sadd.s32 %s239, 1
      %p243 = scmp.eq.s32.totalorder %s32, 1
      %p244 = scmp.ne.s32.totalorder %s239, %s241
      %p245 = scmp.eq.s32.totalorder %s32, 0
      %p246 = por %p244, %p245
      %p247 = scmp.ne.s32.totalorder %s239, %s241
      %p248 = scmp.eq.s32.totalorder %s37, 1
      %p249 = por %p247, %p248
      %p250 = scmp.ne.s32.totalorder %s241, %s242
      %p251 = scmp.eq.s32.totalorder %s37, 0
      %p252 = por %p250, %p251
      %p253 = scmp.ne.s32.totalorder %s241, %s242
      %p254 = scmp.eq.s32.totalorder %s38, 1
      %p255 = por %p253, %p254
      %p257 = scmp.ne.s32.totalorder %s242, %s256
      %p258 = scmp.eq.s32.totalorder %s38, 0
      %p259 = por %p257, %p258
      %s260 = ssub.s32 %s32, %s39
      %p261 = scmp.eq.s32.totalorder %s260, 0
      %s263 = sadd.s32 %s262, 1
      %s264 = scalar_select %p261, %s262, %s263
      %p267 = pneg %p261
      %p268 = scmp.eq.s32.totalorder %s32, 1
      %p269 = por %p267, %p268
      %p270 = scmp.ne.s32.totalorder %s262, %s265
      %p271 = scmp.eq.s32.totalorder %s32, 0
      %p272 = por %p270, %p271
      %p273 = scmp.ne.s32.totalorder %s262, %s265
      %p274 = scmp.eq.s32.totalorder %s37, 1
      %p275 = por %p273, %p274
      %p276 = scmp.ne.s32.totalorder %s265, %s266
      %p277 = scmp.eq.s32.totalorder %s37, 0
      %p278 = por %p276, %p277
      %p279 = scmp.ne.s32.totalorder %s265, %s266
      %p280 = scmp.eq.s32.totalorder %s38, 1
      %p281 = por %p279, %p280
      %p283 = scmp.ne.s32.totalorder %s266, %s282
      %p284 = scmp.eq.s32.totalorder %s38, 0
      %p285 = por %p283, %p284
      %s286 = ssub.s32 %s32, %s39
      %p287 = scmp.eq.s32.totalorder %s286, 0
      %s289 = sadd.s32 %s288, 1
      %s290 = scalar_select %p287, %s288, %s289
      %p293 = pneg %p287
      %p294 = scmp.eq.s32.totalorder %s32, 1
      %p295 = por %p293, %p294
      %p296 = scmp.ne.s32.totalorder %s288, %s291
      %p297 = scmp.eq.s32.totalorder %s32, 0
      %p298 = por %p296, %p297
      %p299 = scmp.ne.s32.totalorder %s288, %s291
      %p300 = scmp.eq.s32.totalorder %s37, 1
      %p301 = por %p299, %p300
      %p302 = scmp.ne.s32.totalorder %s291, %s292
      %p303 = scmp.eq.s32.totalorder %s37, 0
      %p304 = por %p302, %p303
      %p305 = scmp.ne.s32.totalorder %s291, %s292
      %p306 = scmp.eq.s32.totalorder %s38, 1
      %p307 = por %p305, %p306
      %p309 = scmp.ne.s32.totalorder %s292, %s308
      %p310 = scmp.eq.s32.totalorder %s38, 0
      %p311 = por %p309, %p310
      %p312 = scmp.le.s32.totalorder 1, %s32
      %p313 = scmp.lt.s32.totalorder %s32, 3
      %p314 = pnand %p312, %p313
      %p315 = pneg %p314
      // Predicated region
      $region9: #{tpu_custom_call.1} parent=5 // pred_check
        _
      $region10: #{tpu_custom_call.1} parent=5 // pred_check_branch
        %317 = sbr.rel (%p314) target = $region12
      $region11: #{tpu_custom_call.1} parent=5 // pred_region
        %s318 = ssub.s32 %s32, 1
        // Predicated region
        $region13: #{tpu_custom_call.1} parent=11 // pred_check
          %p319 = pneg %p105
        $region14: #{tpu_custom_call.1} parent=11 // pred_check_branch
          %321 = sbr.rel (%p319) target = $region16
        $region15: #{tpu_custom_call.1} parent=11 // pred_region
          %s323 = ssub.s32 2048, 2048
          %324 = vsyncadd [#allocation6], %s323
          %s325 = sshll.u32 [#allocation7], 4
          %s326 = int_to_ptr.vmem [resolvable:$true] %s325
          %331 = dma.hbm_to_vmem [thread:$0]  %s2, 2048, %s326, [#allocation6], 64, 64, 4
        $region16: #{tpu_custom_call.1} parent=11 // pred_fallthru
          _
        // Predicated region
        $region17: #{tpu_custom_call.1} parent=11 // pred_check
          %p332 = pneg %p126
        $region18: #{tpu_custom_call.1} parent=11 // pred_check_branch
          %334 = sbr.rel (%p332) target = $region20
        $region19: #{tpu_custom_call.1} parent=11 // pred_region
          _
        $region20: #{tpu_custom_call.1} parent=11 // pred_fallthru
          _
        // Predicated region
        $region21: #{tpu_custom_call.1} parent=11 // pred_check
          %p335 = pneg %p147
        $region22: #{tpu_custom_call.1} parent=11 // pred_check_branch
          %337 = sbr.rel (%p335) target = $region24
        $region23: #{tpu_custom_call.1} parent=11 // pred_region
          %s339 = ssub.s32 2048, 2048
          %340 = vsyncadd [#allocation9], %s339
          %s341 = sshll.u32 [#allocation8], 4
          %s342 = int_to_ptr.vmem [resolvable:$true] %s341
          %347 = dma.hbm_to_vmem [thread:$0]  %s4, 2048, %s342, [#allocation9], 128, 128, 8
        $region24: #{tpu_custom_call.1} parent=11 // pred_fallthru
          _
        // Predicated region
        $region25: #{tpu_custom_call.1} parent=11 // pred_check
          %p348 = pneg %p168
        $region26: #{tpu_custom_call.1} parent=11 // pred_check_branch
          %350 = sbr.rel (%p348) target = $region28
        $region27: #{tpu_custom_call.1} parent=11 // pred_region
          _
        $region28: #{tpu_custom_call.1} parent=11 // pred_fallthru
          _
        // Predicated region
        $region29: #{tpu_custom_call.1} parent=11 // pred_check
          %p351 = pneg %p189
        $region30: #{tpu_custom_call.1} parent=11 // pred_check_branch
          %353 = sbr.rel (%p351) target = $region32
        $region31: #{tpu_custom_call.1} parent=11 // pred_region
          %s355 = ssub.s32 1024, 1024
          %356 = vsyncadd [#allocation9], %s355
          %s357 = sshll.u32 [#allocation10], 4
          %s358 = int_to_ptr.vmem [resolvable:$true] %s357
          %363 = dma.hbm_to_vmem [thread:$0]  %s6, 1024, %s358, [#allocation9], 64, 64, 4
        $region32: #{tpu_custom_call.1} parent=11 // pred_fallthru
          _
        // Predicated region
        $region33: #{tpu_custom_call.1} parent=11 // pred_check
          %p364 = pneg %p210
        $region34: #{tpu_custom_call.1} parent=11 // pred_check_branch
          %366 = sbr.rel (%p364) target = $region36
        $region35: #{tpu_custom_call.1} parent=11 // pred_region
          _
        $region36: #{tpu_custom_call.1} parent=11 // pred_fallthru
          _
        // Predicated region
        $region37: #{tpu_custom_call.1} parent=11 // pred_check
          %p367 = pneg %p231
        $region38: #{tpu_custom_call.1} parent=11 // pred_check_branch
          %369 = sbr.rel (%p367) target = $region40
        $region39: #{tpu_custom_call.1} parent=11 // pred_region
          %s371 = ssub.s32 1024, 1024
          %372 = vsyncadd [#allocation12], %s371
          %s373 = sshll.u32 [#allocation11], 4
          %s374 = int_to_ptr.vmem [resolvable:$true] %s373
          %379 = dma.hbm_to_vmem [thread:$0]  %s8, 1024, %s374, [#allocation12], 64, 64, 4
        $region40: #{tpu_custom_call.1} parent=11 // pred_fallthru
          _
        // Predicated region
        $region41: #{tpu_custom_call.1} parent=11 // pred_check
          %p380 = pneg %p252
        $region42: #{tpu_custom_call.1} parent=11 // pred_check_branch
          %382 = sbr.rel (%p380) target = $region44
        $region43: #{tpu_custom_call.1} parent=11 // pred_region
          _
        $region44: #{tpu_custom_call.1} parent=11 // pred_fallthru
          _
      $region12: #{tpu_custom_call.1} parent=5 // pred_fallthru
        _
      %p383 = scmp.lt.s32.totalorder %s32, 2
      // Predicated region
      $region45: #{tpu_custom_call.1} parent=5 // pred_check
        %p384 = pneg %p383
      $region46: #{tpu_custom_call.1} parent=5 // pred_check_branch
        %386 = sbr.rel (%p384) target = $region48
      $region47: #{tpu_custom_call.1} parent=5 // pred_region
        // Predicated region
        $region49: #{tpu_custom_call.1} parent=47 // pred_check
          %p387 = pneg %p52
        $region50: #{tpu_custom_call.1} parent=47 // pred_check_branch
          %389 = sbr.rel (%p387) target = $region52
        $region51: #{tpu_custom_call.1} parent=47 // pred_region
          %s390 = sand.u32 %s42, 1
          %s391 = scalar_lea.sflag [#allocation3], %s390
          %s392 = sand.u32 %s42, 1
          %s393 = smul.addr %s392, 32
          %s394 = scalar_lea.vmem [#allocation2], %s393
          %s395 = smul.u32 4, %s32
          %s397 = ssub.s32 512, 512
          %398 = vsyncadd %s391, %s397
          %s399 = smul.addr %s395, 2
          %s400 = smul.addr %s399, 64
          %s401 = scalar_lea.hbm %s0, %s400
          %s402 = sshll.u32 %s394, 4
          %s403 = int_to_ptr.vmem [resolvable:$true] %s402
          %408 = dma.hbm_to_vmem [thread:$0]  %s401, 512, %s403, %s391, 128, 128, 8
        $region52: #{tpu_custom_call.1} parent=47 // pred_fallthru
          _
        // Predicated region
        $region53: #{tpu_custom_call.1} parent=47 // pred_check
          %p409 = pneg %p78
        $region54: #{tpu_custom_call.1} parent=47 // pred_check_branch
          %411 = sbr.rel (%p409) target = $region56
        $region55: #{tpu_custom_call.1} parent=47 // pred_region
          %s412 = sand.u32 %s32, 1
          %s413 = scalar_lea.sflag [#allocation6], %s412
          %s414 = sand.u32 %s68, 1
          %s415 = smul.addr %s414, 32
          %s416 = scalar_lea.vmem [#allocation5], %s415
          %s417 = smul.u32 4, %s32
          %s419 = ssub.s32 512, 512
          %420 = vsyncadd %s413, %s419
          %s421 = smul.addr %s417, 128
          %s422 = scalar_lea.hbm %s1, %s421
          %s423 = sshll.u32 %s416, 4
          %s424 = int_to_ptr.vmem [resolvable:$true] %s423
          %429 = dma.hbm_to_vmem [thread:$0]  %s422, 512, %s424, %s413, 128, 128, 8
        $region56: #{tpu_custom_call.1} parent=47 // pred_fallthru
          _
      $region48: #{tpu_custom_call.1} parent=5 // pred_fallthru
        _
      %p430 = scmp.le.s32.totalorder 1, %s32
      %p431 = scmp.lt.s32.totalorder %s32, 3
      %p432 = pnand %p430, %p431
      %p433 = pneg %p432
      // Predicated region
      $region57: #{tpu_custom_call.1} parent=5 // pred_check
        _
      $region58: #{tpu_custom_call.1} parent=5 // pred_check_branch
        %435 = sbr.rel (%p432) target = $region60
      $region59: #{tpu_custom_call.1} parent=5 // pred_region
        %s436 = ssub.s32 %s32, 1
        %s437 = sand.u32 %s45, 1
        %s438 = scalar_lea.sflag [#allocation3], %s437
        %s439 = sand.u32 %s45, 1
        %s440 = smul.addr %s439, 32
        %s441 = scalar_lea.vmem [#allocation2], %s440
        // Predicated region
        $region61: #{tpu_custom_call.1} parent=59 // pred_check
          %p442 = pneg %p58
        $region62: #{tpu_custom_call.1} parent=59 // pred_check_branch
          %444 = sbr.rel (%p442) target = $region64
        $region63: #{tpu_custom_call.1} parent=59 // pred_region
          %445 = dma.done %s438, 512
        $region64: #{tpu_custom_call.1} parent=59 // pred_fallthru
          _
        %s446 = sand.u32 %s37, 1
        %s447 = scalar_lea.sflag [#allocation6], %s446
        %s448 = sand.u32 %s71, 1
        %s449 = smul.addr %s448, 32
        %s450 = scalar_lea.vmem [#allocation5], %s449
        // Predicated region
        $region65: #{tpu_custom_call.1} parent=59 // pred_check
          %p451 = pneg %p84
        $region66: #{tpu_custom_call.1} parent=59 // pred_check_branch
          %453 = sbr.rel (%p451) target = $region68
        $region67: #{tpu_custom_call.1} parent=59 // pred_region
          %454 = dma.done %s447, 512
        $region68: #{tpu_custom_call.1} parent=59 // pred_fallthru
          _
        // Predicated region
        $region69: #{tpu_custom_call.1} parent=59 // pred_check
          %p455 = pneg %p105
        $region70: #{tpu_custom_call.1} parent=59 // pred_check_branch
          %457 = sbr.rel (%p455) target = $region72
        $region71: #{tpu_custom_call.1} parent=59 // pred_region
          %458 = dma.done [#allocation6], 2048
        $region72: #{tpu_custom_call.1} parent=59 // pred_fallthru
          _
        // Predicated region
        $region73: #{tpu_custom_call.1} parent=59 // pred_check
          %p459 = pneg %p147
        $region74: #{tpu_custom_call.1} parent=59 // pred_check_branch
          %461 = sbr.rel (%p459) target = $region76
        $region75: #{tpu_custom_call.1} parent=59 // pred_region
          %462 = dma.done [#allocation9], 2048
        $region76: #{tpu_custom_call.1} parent=59 // pred_fallthru
          _
        // Predicated region
        $region77: #{tpu_custom_call.1} parent=59 // pred_check
          %p463 = pneg %p189
        $region78: #{tpu_custom_call.1} parent=59 // pred_check_branch
          %465 = sbr.rel (%p463) target = $region80
        $region79: #{tpu_custom_call.1} parent=59 // pred_region
          %466 = dma.done [#allocation9], 1024
        $region80: #{tpu_custom_call.1} parent=59 // pred_fallthru
          _
        // Predicated region
        $region81: #{tpu_custom_call.1} parent=59 // pred_check
          %p467 = pneg %p231
        $region82: #{tpu_custom_call.1} parent=59 // pred_check_branch
          %469 = sbr.rel (%p467) target = $region84
        $region83: #{tpu_custom_call.1} parent=59 // pred_region
          %470 = dma.done [#allocation12], 1024
        $region84: #{tpu_custom_call.1} parent=59 // pred_fallthru
          _
        %s471 = sand.u32 %s45, 1
        %s472 = scalar_lea.sflag [#allocation3], %s471
        %s473 = sand.u32 %s45, 1
        %s474 = smul.addr %s473, 32
        %s475 = scalar_lea.vmem [#allocation2], %s474
        %p476 = pneg %p58
        %p477 = pneg %p55
        %s478 = sand.u32 %s37, 1
        %s479 = scalar_lea.sflag [#allocation6], %s478
        %s480 = sand.u32 %s71, 1
        %s481 = smul.addr %s480, 32
        %s482 = scalar_lea.vmem [#allocation5], %s481
        %p483 = pneg %p84
        %p484 = pneg %p81
        %p485 = pneg %p105
        %p486 = pneg %p102
        %p487 = pneg %p126
        %p488 = pneg %p123
        %p489 = pneg %p147
        %p490 = pneg %p144
        %p491 = pneg %p168
        %p492 = pneg %p165
        %p493 = pneg %p189
        %p494 = pneg %p186
        %p495 = pneg %p210
        %p496 = pneg %p207
        %p497 = pneg %p231
        %p498 = pneg %p228
        %p499 = pneg %p252
        %p500 = pneg %p249
        %p501 = pneg %p278
        %p502 = pneg %p275
        %s503 = sand.u32 %s265, 1
        %s504 = scalar_lea.sflag [#allocation4], %s503
        %s505 = sand.u32 %s265, 1
        %s506 = smul.addr %s505, 32
        %s507 = scalar_lea.vmem [#allocation13], %s506
        %p508 = pneg %p304
        %p509 = pneg %p301
        %s510 = sand.u32 %s291, 1
        %s511 = scalar_lea.sflag [#allocation15], %s510
        %s512 = sand.u32 %s291, 1
        %s513 = smul.addr %s512, 64
        %s514 = scalar_lea.vmem [#allocation14], %s513
        %s515 = smul.u32 4, %s37
        %s516 = smul.u32 4, %s37
        %s517 = smul.u32 4, %s37
        %s518 = smul.u32 4, %s37
        %v520 = vld [vmem:[%s441] sm:$0xff]
        %v521 = vld [vmem:[%s441 + $0x8] sm:$0xff]
        %v522 = vld [vmem:[%s441 + $0x10] sm:$0xff]
        %v523 = vld [vmem:[%s441 + $0x18] sm:$0xff]
        %v524 = vld [vmem:[#allocation7] sm:$0xf]
        %v525 = vld [vmem:[#allocation7 + $0x4] sm:$0xf]
        %v526 = vld [vmem:[#allocation7 + $0x8] sm:$0xf]
        %v527 = vld [vmem:[#allocation7 + $0xc] sm:$0xf]
        %v528 = vld [vmem:[#allocation7 + $0x10] sm:$0xf]
        %v529 = vld [vmem:[#allocation7 + $0x14] sm:$0xf]
        %v530 = vld [vmem:[#allocation7 + $0x18] sm:$0xf]
        %v531 = vld [vmem:[#allocation7 + $0x1c] sm:$0xf]
        %v532 = vld [vmem:[#allocation7 + $0x20] sm:$0xf]
        %v533 = vld [vmem:[#allocation7 + $0x24] sm:$0xf]
        %v534 = vld [vmem:[#allocation7 + $0x28] sm:$0xf]
        %v535 = vld [vmem:[#allocation7 + $0x2c] sm:$0xf]
        %v536 = vld [vmem:[#allocation7 + $0x30] sm:$0xf]
        %v537 = vld [vmem:[#allocation7 + $0x34] sm:$0xf]
        %v538 = vld [vmem:[#allocation7 + $0x38] sm:$0xf]
        %v539 = vld [vmem:[#allocation7 + $0x3c] sm:$0xf]
        %v540 = vld [vmem:[#allocation7 + $0x40] sm:$0xf]
        %v541 = vld [vmem:[#allocation7 + $0x44] sm:$0xf]
        %v542 = vld [vmem:[#allocation7 + $0x48] sm:$0xf]
        %v543 = vld [vmem:[#allocation7 + $0x4c] sm:$0xf]
        %v544 = vld [vmem:[#allocation7 + $0x50] sm:$0xf]
        %v545 = vld [vmem:[#allocation7 + $0x54] sm:$0xf]
        %v546 = vld [vmem:[#allocation7 + $0x58] sm:$0xf]
        %v547 = vld [vmem:[#allocation7 + $0x5c] sm:$0xf]
        %v548 = vld [vmem:[#allocation7 + $0x60] sm:$0xf]
        %v549 = vld [vmem:[#allocation7 + $0x64] sm:$0xf]
        %v550 = vld [vmem:[#allocation7 + $0x68] sm:$0xf]
        %v551 = vld [vmem:[#allocation7 + $0x6c] sm:$0xf]
        %v552 = vld [vmem:[#allocation7 + $0x70] sm:$0xf]
        %v553 = vld [vmem:[#allocation7 + $0x74] sm:$0xf]
        %v554 = vld [vmem:[#allocation7 + $0x78] sm:$0xf]
        %v555 = vld [vmem:[#allocation7 + $0x7c] sm:$0xf]
        %v556 = vld [vmem:[%s3] sm:$0x1]
        %v558 = vlaneseq
        %v559 = vshrl.u32 %v558, 7
        %v560 = vsub.s32 0, %v559
        %v561 = vrot.slane %v556, %v560
        %v567 = vunpack.c.l.b16 %v520
        %v568 = vunpack.c.h.b16 %v520
        %v569 = vunpack.c.l.b16 %v521
        %v570 = vunpack.c.h.b16 %v521
        %v571 = vunpack.c.l.b16 %v522
        %v572 = vunpack.c.h.b16 %v522
        %v573 = vunpack.c.l.b16 %v523
        %v574 = vunpack.c.h.b16 %v523
        %v575 = vpack.c.b16 %v569, %v567
        %v576 = vpack.c.b16 %v570, %v568
        %v577 = vpack.c.b16 %v573, %v571
        %v578 = vpack.c.b16 %v574, %v572
        %v615 = vunpack.c.l.b16 %v524
        %v616 = vunpack.c.l.b16 %v525
        %v617 = vunpack.c.l.b16 %v526
        %v618 = vunpack.c.l.b16 %v527
        %v619 = vunpack.c.l.b16 %v528
        %v620 = vunpack.c.l.b16 %v529
        %v621 = vunpack.c.l.b16 %v530
        %v622 = vunpack.c.l.b16 %v531
        %v623 = vunpack.c.l.b16 %v532
        %v624 = vunpack.c.l.b16 %v533
        %v625 = vunpack.c.l.b16 %v534
        %v626 = vunpack.c.l.b16 %v535
        %v627 = vunpack.c.l.b16 %v536
        %v628 = vunpack.c.l.b16 %v537
        %v629 = vunpack.c.l.b16 %v538
        %v630 = vunpack.c.l.b16 %v539
        %v631 = vunpack.c.l.b16 %v540
        %v632 = vunpack.c.l.b16 %v541
        %v633 = vunpack.c.l.b16 %v542
        %v634 = vunpack.c.l.b16 %v543
        %v635 = vunpack.c.l.b16 %v544
        %v636 = vunpack.c.l.b16 %v545
        %v637 = vunpack.c.l.b16 %v546
        %v638 = vunpack.c.l.b16 %v547
        %v639 = vunpack.c.l.b16 %v548
        %v640 = vunpack.c.l.b16 %v549
        %v641 = vunpack.c.l.b16 %v550
        %v642 = vunpack.c.l.b16 %v551
        %v643 = vunpack.c.l.b16 %v552
        %v644 = vunpack.c.l.b16 %v553
        %v645 = vunpack.c.l.b16 %v554
        %v646 = vunpack.c.l.b16 %v555
        %v647 = vpack.c.b16 %v616, %v615
        %v648 = vpack.c.b16 %v618, %v617
        %v649 = vpack.c.b16 %v620, %v619
        %v650 = vpack.c.b16 %v622, %v621
        %v651 = vpack.c.b16 %v624, %v623
        %v652 = vpack.c.b16 %v626, %v625
        %v653 = vpack.c.b16 %v628, %v627
        %v654 = vpack.c.b16 %v630, %v629
        %v655 = vpack.c.b16 %v632, %v631
        %v656 = vpack.c.b16 %v634, %v633
        %v657 = vpack.c.b16 %v636, %v635
        %v658 = vpack.c.b16 %v638, %v637
        %v659 = vpack.c.b16 %v640, %v639
        %v660 = vpack.c.b16 %v642, %v641
        %v661 = vpack.c.b16 %v644, %v643
        %v662 = vpack.c.b16 %v646, %v645
        %679 = vmatprep.subr.bf16.mxu0 0
        %680 = vmatpush1.bf16.msra.mxu0 %v654
        %681 = vmatprep.subr.bf16.mxu0 0
        %682 = vmatpush1.bf16.msra.mxu0 %v653
        %683 = vmatprep.subr.bf16.mxu0 0
        %684 = vmatpush1.bf16.msra.mxu0 %v652
        %685 = vmatprep.subr.bf16.mxu0 0
        %686 = vmatpush1.bf16.msra.mxu0 %v651
        %687 = vmatprep.subr.bf16.mxu0 0
        %688 = vmatpush1.bf16.msra.mxu0 %v650
        %689 = vmatprep.subr.bf16.mxu0 0
        %690 = vmatpush1.bf16.msra.mxu0 %v649
        %691 = vmatprep.subr.bf16.mxu0 0
        %692 = vmatpush1.bf16.msra.mxu0 %v648
        %693 = vmatprep.subr.bf16.mxu0 0
        %694 = vmatpush1.bf16.msra.mxu0 %v647
        %695 = vmatprep.subr.bf16.mxu0 0
        %696 = vmatpush2.bf16.msra.mxu0 %v662
        %697 = vmatprep.subr.bf16.mxu0 0
        %698 = vmatpush2.bf16.msra.mxu0 %v661
        %699 = vmatprep.subr.bf16.mxu0 0
        %700 = vmatpush2.bf16.msra.mxu0 %v660
        %701 = vmatprep.subr.bf16.mxu0 0
        %702 = vmatpush2.bf16.msra.mxu0 %v659
        %703 = vmatprep.subr.bf16.mxu0 0
        %704 = vmatpush2.bf16.msra.mxu0 %v658
        %705 = vmatprep.subr.bf16.mxu0 0
        %706 = vmatpush2.bf16.msra.mxu0 %v657
        %707 = vmatprep.subr.bf16.mxu0 0
        %708 = vmatpush2.bf16.msra.mxu0 %v656
        %709 = vmatprep.subr.bf16.mxu0 0
        %710 = vmatpush2.bf16.msra.mxu0 %v655
        %711 = vmatprep.mubr.bf16.mxu0 %v576
        %712 = vmatmul.mubr.bf16.gmra.mxu0 %v575
        %v713 = vpop.f32.mrf.mxu0
        %v714 = vadd.f32 %v561, %v713
        %v715 = vpop.f32.mrf.mxu0
        %v716 = vpop.f32.mrf.mxu0
        %v717 = vadd.f32 %v561, %v716
        %v718 = vpop.f32.mrf.mxu0
        %719 = vmatprep.mubr.bf16.mxu0 %v578
        %720 = vmatmul.mubr.bf16.gmra.mxu0 %v577
        %v721 = vpop.f32.mrf.mxu0
        %v722 = vadd.f32 %v561, %v721
        %v723 = vpop.f32.mrf.mxu0
        %v724 = vpop.f32.mrf.mxu0
        %v725 = vadd.f32 %v561, %v724
        %v726 = vpop.f32.mrf.mxu0
        %727 = vdwg.mxu0
        %v728 = vmax.f32 %v714, 0.0
        %v729 = vmax.f32 %v717, 0.0
        %v730 = vmax.f32 %v722, 0.0
        %v731 = vmax.f32 %v725, 0.0
        %v732 = vpack.c.bf16 %v729, %v728
        %v733 = vpack.c.bf16 %v731, %v730
        %v734 = vld [vmem:[#allocation8] sm:$0xff]
        %v735 = vld [vmem:[#allocation8 + $0x8] sm:$0xff]
        %v736 = vld [vmem:[#allocation8 + $0x10] sm:$0xff]
        %v737 = vld [vmem:[#allocation8 + $0x18] sm:$0xff]
        %v738 = vld [vmem:[#allocation8 + $0x20] sm:$0xff]
        %v739 = vld [vmem:[#allocation8 + $0x28] sm:$0xff]
        %v740 = vld [vmem:[#allocation8 + $0x30] sm:$0xff]
        %v741 = vld [vmem:[#allocation8 + $0x38] sm:$0xff]
        %v742 = vld [vmem:[#allocation8 + $0x40] sm:$0xff]
        %v743 = vld [vmem:[#allocation8 + $0x48] sm:$0xff]
        %v744 = vld [vmem:[#allocation8 + $0x50] sm:$0xff]
        %v745 = vld [vmem:[#allocation8 + $0x58] sm:$0xff]
        %v746 = vld [vmem:[#allocation8 + $0x60] sm:$0xff]
        %v747 = vld [vmem:[#allocation8 + $0x68] sm:$0xff]
        %v748 = vld [vmem:[#allocation8 + $0x70] sm:$0xff]
        %v749 = vld [vmem:[#allocation8 + $0x78] sm:$0xff]
        %v750 = vld [vmem:[%s5] sm:$0x3]
        %v752 = vlaneseq
        %v753 = vshrl.u32 %v752, 7
        %v754 = vsub.s32 0, %v753
        %v755 = vrot.slane %v750, %v754
        %v756 = vlaneseq
        %v757 = vshrl.u32 %v756, 7
        %v758 = vsub.s32 1, %v757
        %v759 = vrot.slane %v750, %v758
        %v778 = vunpack.c.l.b16 %v734
        %v779 = vunpack.c.h.b16 %v734
        %v780 = vunpack.c.l.b16 %v735
        %v781 = vunpack.c.h.b16 %v735
        %v782 = vunpack.c.l.b16 %v736
        %v783 = vunpack.c.h.b16 %v736
        %v784 = vunpack.c.l.b16 %v737
        %v785 = vunpack.c.h.b16 %v737
        %v786 = vunpack.c.l.b16 %v738
        %v787 = vunpack.c.h.b16 %v738
        %v788 = vunpack.c.l.b16 %v739
        %v789 = vunpack.c.h.b16 %v739
        %v790 = vunpack.c.l.b16 %v740
        %v791 = vunpack.c.h.b16 %v740
        %v792 = vunpack.c.l.b16 %v741
        %v793 = vunpack.c.h.b16 %v741
        %v794 = vunpack.c.l.b16 %v742
        %v795 = vunpack.c.h.b16 %v742
        %v796 = vunpack.c.l.b16 %v743
        %v797 = vunpack.c.h.b16 %v743
        %v798 = vunpack.c.l.b16 %v744
        %v799 = vunpack.c.h.b16 %v744
        %v800 = vunpack.c.l.b16 %v745
        %v801 = vunpack.c.h.b16 %v745
        %v802 = vunpack.c.l.b16 %v746
        %v803 = vunpack.c.h.b16 %v746
        %v804 = vunpack.c.l.b16 %v747
        %v805 = vunpack.c.h.b16 %v747
        %v806 = vunpack.c.l.b16 %v748
        %v807 = vunpack.c.h.b16 %v748
        %v808 = vunpack.c.l.b16 %v749
        %v809 = vunpack.c.h.b16 %v749
        %v810 = vpack.c.b16 %v780, %v778
        %v811 = vpack.c.b16 %v781, %v779
        %v812 = vpack.c.b16 %v784, %v782
        %v813 = vpack.c.b16 %v785, %v783
        %v814 = vpack.c.b16 %v788, %v786
        %v815 = vpack.c.b16 %v789, %v787
        %v816 = vpack.c.b16 %v792, %v790
        %v817 = vpack.c.b16 %v793, %v791
        %v818 = vpack.c.b16 %v796, %v794
        %v819 = vpack.c.b16 %v797, %v795
        %v820 = vpack.c.b16 %v800, %v798
        %v821 = vpack.c.b16 %v801, %v799
        %v822 = vpack.c.b16 %v804, %v802
        %v823 = vpack.c.b16 %v805, %v803
        %v824 = vpack.c.b16 %v808, %v806
        %v825 = vpack.c.b16 %v809, %v807
        %842 = vmatprep.subr.bf16.mxu0 %v825
        %843 = vmatpush1.bf16.msra.mxu0 %v824
        %844 = vmatprep.subr.bf16.mxu0 %v823
        %845 = vmatpush1.bf16.msra.mxu0 %v822
        %846 = vmatprep.subr.bf16.mxu0 %v821
        %847 = vmatpush1.bf16.msra.mxu0 %v820
        %848 = vmatprep.subr.bf16.mxu0 %v819
        %849 = vmatpush1.bf16.msra.mxu0 %v818
        %850 = vmatprep.subr.bf16.mxu0 %v817
        %851 = vmatpush1.bf16.msra.mxu0 %v816
        %852 = vmatprep.subr.bf16.mxu0 %v815
        %853 = vmatpush1.bf16.msra.mxu0 %v814
        %854 = vmatprep.subr.bf16.mxu0 %v813
        %855 = vmatpush1.bf16.msra.mxu0 %v812
        %856 = vmatprep.subr.bf16.mxu0 %v811
        %857 = vmatpush1.bf16.msra.mxu0 %v810
        %858 = vmatprep.subr.bf16.mxu0 0
        %859 = vmatpush2.bf16.msra.mxu0 0
        %860 = vmatprep.subr.bf16.mxu0 0
        %861 = vmatpush2.bf16.msra.mxu0 0
        %862 = vmatprep.subr.bf16.mxu0 0
        %863 = vmatpush2.bf16.msra.mxu0 0
        %864 = vmatprep.subr.bf16.mxu0 0
        %865 = vmatpush2.bf16.msra.mxu0 0
        %866 = vmatprep.subr.bf16.mxu0 0
        %867 = vmatpush2.bf16.msra.mxu0 0
        %868 = vmatprep.subr.bf16.mxu0 0
        %869 = vmatpush2.bf16.msra.mxu0 0
        %870 = vmatprep.subr.bf16.mxu0 0
        %871 = vmatpush2.bf16.msra.mxu0 0
        %872 = vmatprep.subr.bf16.mxu0 0
        %873 = vmatpush2.bf16.msra.mxu0 0
        %874 = vmatprep.mubr.bf16.mxu0 0
        %875 = vmatmul.mubr.bf16.gmra.mxu0 %v732
        %v876 = vpop.f32.mrf.mxu0
        %v877 = vadd.f32 %v755, %v876
        %v878 = vpop.f32.mrf.mxu0
        %v879 = vadd.f32 %v759, %v878
        %v880 = vpop.f32.mrf.mxu0
        %v881 = vadd.f32 %v755, %v880
        %v882 = vpop.f32.mrf.mxu0
        %v883 = vadd.f32 %v759, %v882
        %884 = vmatprep.mubr.bf16.mxu0 0
        %885 = vmatmul.mubr.bf16.gmra.mxu0 %v733
        %v886 = vpop.f32.mrf.mxu0
        %v887 = vadd.f32 %v755, %v886
        %v888 = vpop.f32.mrf.mxu0
        %v889 = vadd.f32 %v759, %v888
        %v890 = vpop.f32.mrf.mxu0
        %v891 = vadd.f32 %v755, %v890
        %v892 = vpop.f32.mrf.mxu0
        %v893 = vadd.f32 %v759, %v892
        %894 = vdwg.mxu0
        %895 = vst [vmem:[%s514] sm:$0xff] %v877
        %896 = vst [vmem:[%s514 + $0x8] sm:$0xff] %v879
        %897 = vst [vmem:[%s514 + $0x10] sm:$0xff] %v881
        %898 = vst [vmem:[%s514 + $0x18] sm:$0xff] %v883
        %899 = vst [vmem:[%s514 + $0x20] sm:$0xff] %v887
        %900 = vst [vmem:[%s514 + $0x28] sm:$0xff] %v889
        %901 = vst [vmem:[%s514 + $0x30] sm:$0xff] %v891
        %902 = vst [vmem:[%s514 + $0x38] sm:$0xff] %v893
        %v903 = vld [vmem:[%s450] sm:$0xff]
        %v904 = vld [vmem:[%s450 + $0x8] sm:$0xff]
        %v905 = vld [vmem:[%s450 + $0x10] sm:$0xff]
        %v906 = vld [vmem:[%s450 + $0x18] sm:$0xff]
        %v907 = vmul.f32 %v879, 0.5
        %v908 = vmul.f32 %v883, 0.5
        %v909 = vmul.f32 %v889, 0.5
        %v910 = vmul.f32 %v893, 0.5
        %v911 = vmul.f32 %v907, 1.442695
        %v912 = vpow.pop %v911
        %v913 = vmul.f32 %v908, 1.442695
        %v914 = vpow.pop %v913
        %v915 = vmul.f32 %v909, 1.442695
        %v916 = vpow.pop %v915
        %v917 = vmul.f32 %v910, 1.442695
        %v918 = vpow.pop %v917
        %v919 = vmul.f32 %v903, %v912
        %v920 = vmul.f32 %v904, %v914
        %v921 = vmul.f32 %v905, %v916
        %v922 = vmul.f32 %v906, %v918
        %v923 = vadd.f32 %v877, %v919
        %v924 = vadd.f32 %v881, %v920
        %v925 = vadd.f32 %v887, %v921
        %v926 = vadd.f32 %v891, %v922
        %v927 = vpack.c.bf16 %v924, %v923
        %v928 = vpack.c.bf16 %v926, %v925
        %v929 = vld [vmem:[#allocation10] sm:$0xf]
        %v930 = vld [vmem:[#allocation10 + $0x4] sm:$0xf]
        %v931 = vld [vmem:[#allocation10 + $0x8] sm:$0xf]
        %v932 = vld [vmem:[#allocation10 + $0xc] sm:$0xf]
        %v933 = vld [vmem:[#allocation10 + $0x10] sm:$0xf]
        %v934 = vld [vmem:[#allocation10 + $0x14] sm:$0xf]
        %v935 = vld [vmem:[#allocation10 + $0x18] sm:$0xf]
        %v936 = vld [vmem:[#allocation10 + $0x1c] sm:$0xf]
        %v937 = vld [vmem:[#allocation10 + $0x20] sm:$0xf]
        %v938 = vld [vmem:[#allocation10 + $0x24] sm:$0xf]
        %v939 = vld [vmem:[#allocation10 + $0x28] sm:$0xf]
        %v940 = vld [vmem:[#allocation10 + $0x2c] sm:$0xf]
        %v941 = vld [vmem:[#allocation10 + $0x30] sm:$0xf]
        %v942 = vld [vmem:[#allocation10 + $0x34] sm:$0xf]
        %v943 = vld [vmem:[#allocation10 + $0x38] sm:$0xf]
        %v944 = vld [vmem:[#allocation10 + $0x3c] sm:$0xf]
        %v945 = vld [vmem:[%s7] sm:$0x1]
        %v947 = vlaneseq
        %v948 = vshrl.u32 %v947, 7
        %v949 = vsub.s32 0, %v948
        %v950 = vrot.slane %v945, %v949
        %v968 = vunpack.c.l.b16 %v929
        %v969 = vunpack.c.l.b16 %v930
        %v970 = vunpack.c.l.b16 %v931
        %v971 = vunpack.c.l.b16 %v932
        %v972 = vunpack.c.l.b16 %v933
        %v973 = vunpack.c.l.b16 %v934
        %v974 = vunpack.c.l.b16 %v935
        %v975 = vunpack.c.l.b16 %v936
        %v976 = vunpack.c.l.b16 %v937
        %v977 = vunpack.c.l.b16 %v938
        %v978 = vunpack.c.l.b16 %v939
        %v979 = vunpack.c.l.b16 %v940
        %v980 = vunpack.c.l.b16 %v941
        %v981 = vunpack.c.l.b16 %v942
        %v982 = vunpack.c.l.b16 %v943
        %v983 = vunpack.c.l.b16 %v944
        %v984 = vpack.c.b16 %v969, %v968
        %v985 = vpack.c.b16 %v971, %v970
        %v986 = vpack.c.b16 %v973, %v972
        %v987 = vpack.c.b16 %v975, %v974
        %v988 = vpack.c.b16 %v977, %v976
        %v989 = vpack.c.b16 %v979, %v978
        %v990 = vpack.c.b16 %v981, %v980
        %v991 = vpack.c.b16 %v983, %v982
        %1000 = vmatprep.subr.bf16.mxu0 0
        %1001 = vmatpush1.bf16.msra.mxu0 %v991
        %1002 = vmatprep.subr.bf16.mxu0 0
        %1003 = vmatpush1.bf16.msra.mxu0 %v990
        %1004 = vmatprep.subr.bf16.mxu0 0
        %1005 = vmatpush1.bf16.msra.mxu0 %v989
        %1006 = vmatprep.subr.bf16.mxu0 0
        %1007 = vmatpush1.bf16.msra.mxu0 %v988
        %1008 = vmatprep.subr.bf16.mxu0 0
        %1009 = vmatpush1.bf16.msra.mxu0 %v987
        %1010 = vmatprep.subr.bf16.mxu0 0
        %1011 = vmatpush1.bf16.msra.mxu0 %v986
        %1012 = vmatprep.subr.bf16.mxu0 0
        %1013 = vmatpush1.bf16.msra.mxu0 %v985
        %1014 = vmatprep.subr.bf16.mxu0 0
        %1015 = vmatpush1.bf16.msra.mxu0 %v984
        %1016 = vmatprep.subr.bf16.mxu0 0
        %1017 = vmatpush2.bf16.msra.mxu0 0
        %1018 = vmatprep.subr.bf16.mxu0 0
        %1019 = vmatpush2.bf16.msra.mxu0 0
        %1020 = vmatprep.subr.bf16.mxu0 0
        %1021 = vmatpush2.bf16.msra.mxu0 0
        %1022 = vmatprep.subr.bf16.mxu0 0
        %1023 = vmatpush2.bf16.msra.mxu0 0
        %1024 = vmatprep.subr.bf16.mxu0 0
        %1025 = vmatpush2.bf16.msra.mxu0 0
        %1026 = vmatprep.subr.bf16.mxu0 0
        %1027 = vmatpush2.bf16.msra.mxu0 0
        %1028 = vmatprep.subr.bf16.mxu0 0
        %1029 = vmatpush2.bf16.msra.mxu0 0
        %1030 = vmatprep.subr.bf16.mxu0 0
        %1031 = vmatpush2.bf16.msra.mxu0 0
        %1032 = vmatprep.mubr.bf16.mxu0 0
        %1033 = vmatmul.mubr.bf16.gmra.mxu0 %v927
        %v1034 = vpop.f32.mrf.mxu0
        %v1035 = vadd.f32 %v950, %v1034
        %v1036 = vpop.f32.mrf.mxu0
        %v1037 = vpop.f32.mrf.mxu0
        %v1038 = vadd.f32 %v950, %v1037
        %v1039 = vpop.f32.mrf.mxu0
        %1040 = vmatprep.mubr.bf16.mxu0 0
        %1041 = vmatmul.mubr.bf16.gmra.mxu0 %v928
        %v1042 = vpop.f32.mrf.mxu0
        %v1043 = vadd.f32 %v950, %v1042
        %v1044 = vpop.f32.mrf.mxu0
        %v1045 = vpop.f32.mrf.mxu0
        %v1046 = vadd.f32 %v950, %v1045
        %v1047 = vpop.f32.mrf.mxu0
        %1048 = vdwg.mxu0
        %v1049 = vmax.f32 %v1035, 0.0
        %v1050 = vmax.f32 %v1038, 0.0
        %v1051 = vmax.f32 %v1043, 0.0
        %v1052 = vmax.f32 %v1046, 0.0
        %v1053 = vpack.c.bf16 %v1050, %v1049
        %v1054 = vpack.c.bf16 %v1052, %v1051
        %v1055 = vld [vmem:[#allocation11] sm:$0xf]
        %v1056 = vld [vmem:[#allocation11 + $0x4] sm:$0xf]
        %v1057 = vld [vmem:[#allocation11 + $0x8] sm:$0xf]
        %v1058 = vld [vmem:[#allocation11 + $0xc] sm:$0xf]
        %v1059 = vld [vmem:[#allocation11 + $0x10] sm:$0xf]
        %v1060 = vld [vmem:[#allocation11 + $0x14] sm:$0xf]
        %v1061 = vld [vmem:[#allocation11 + $0x18] sm:$0xf]
        %v1062 = vld [vmem:[#allocation11 + $0x1c] sm:$0xf]
        %v1063 = vld [vmem:[#allocation11 + $0x20] sm:$0xf]
        %v1064 = vld [vmem:[#allocation11 + $0x24] sm:$0xf]
        %v1065 = vld [vmem:[#allocation11 + $0x28] sm:$0xf]
        %v1066 = vld [vmem:[#allocation11 + $0x2c] sm:$0xf]
        %v1067 = vld [vmem:[#allocation11 + $0x30] sm:$0xf]
        %v1068 = vld [vmem:[#allocation11 + $0x34] sm:$0xf]
        %v1069 = vld [vmem:[#allocation11 + $0x38] sm:$0xf]
        %v1070 = vld [vmem:[#allocation11 + $0x3c] sm:$0xf]
        %v1071 = vld [vmem:[%s9] sm:$0x1]
        %v1073 = vlaneseq
        %v1074 = vshrl.u32 %v1073, 7
        %v1075 = vsub.s32 0, %v1074
        %v1076 = vrot.slane %v1071, %v1075
        %v1094 = vunpack.c.l.b16 %v1055
        %v1095 = vunpack.c.l.b16 %v1056
        %v1096 = vunpack.c.l.b16 %v1057
        %v1097 = vunpack.c.l.b16 %v1058
        %v1098 = vunpack.c.l.b16 %v1059
        %v1099 = vunpack.c.l.b16 %v1060
        %v1100 = vunpack.c.l.b16 %v1061
        %v1101 = vunpack.c.l.b16 %v1062
        %v1102 = vunpack.c.l.b16 %v1063
        %v1103 = vunpack.c.l.b16 %v1064
        %v1104 = vunpack.c.l.b16 %v1065
        %v1105 = vunpack.c.l.b16 %v1066
        %v1106 = vunpack.c.l.b16 %v1067
        %v1107 = vunpack.c.l.b16 %v1068
        %v1108 = vunpack.c.l.b16 %v1069
        %v1109 = vunpack.c.l.b16 %v1070
        %v1110 = vpack.c.b16 %v1095, %v1094
        %v1111 = vpack.c.b16 %v1097, %v1096
        %v1112 = vpack.c.b16 %v1099, %v1098
        %v1113 = vpack.c.b16 %v1101, %v1100
        %v1114 = vpack.c.b16 %v1103, %v1102
        %v1115 = vpack.c.b16 %v1105, %v1104
        %v1116 = vpack.c.b16 %v1107, %v1106
        %v1117 = vpack.c.b16 %v1109, %v1108
        %1126 = vmatprep.subr.bf16.mxu0 0
        %1127 = vmatpush1.bf16.msra.mxu0 %v1117
        %1128 = vmatprep.subr.bf16.mxu0 0
        %1129 = vmatpush1.bf16.msra.mxu0 %v1116
        %1130 = vmatprep.subr.bf16.mxu0 0
        %1131 = vmatpush1.bf16.msra.mxu0 %v1115
        %1132 = vmatprep.subr.bf16.mxu0 0
        %1133 = vmatpush1.bf16.msra.mxu0 %v1114
        %1134 = vmatprep.subr.bf16.mxu0 0
        %1135 = vmatpush1.bf16.msra.mxu0 %v1113
        %1136 = vmatprep.subr.bf16.mxu0 0
        %1137 = vmatpush1.bf16.msra.mxu0 %v1112
        %1138 = vmatprep.subr.bf16.mxu0 0
        %1139 = vmatpush1.bf16.msra.mxu0 %v1111
        %1140 = vmatprep.subr.bf16.mxu0 0
        %1141 = vmatpush1.bf16.msra.mxu0 %v1110
        %1142 = vmatprep.subr.bf16.mxu0 0
        %1143 = vmatpush2.bf16.msra.mxu0 0
        %1144 = vmatprep.subr.bf16.mxu0 0
        %1145 = vmatpush2.bf16.msra.mxu0 0
        %1146 = vmatprep.subr.bf16.mxu0 0
        %1147 = vmatpush2.bf16.msra.mxu0 0
        %1148 = vmatprep.subr.bf16.mxu0 0
        %1149 = vmatpush2.bf16.msra.mxu0 0
        %1150 = vmatprep.subr.bf16.mxu0 0
        %1151 = vmatpush2.bf16.msra.mxu0 0
        %1152 = vmatprep.subr.bf16.mxu0 0
        %1153 = vmatpush2.bf16.msra.mxu0 0
        %1154 = vmatprep.subr.bf16.mxu0 0
        %1155 = vmatpush2.bf16.msra.mxu0 0
        %1156 = vmatprep.subr.bf16.mxu0 0
        %1157 = vmatpush2.bf16.msra.mxu0 0
        %1158 = vmatprep.mubr.bf16.mxu0 0
        %1159 = vmatmul.mubr.bf16.gmra.mxu0 %v1053
        %v1160 = vpop.f32.mrf.mxu0
        %v1161 = vadd.f32 %v1076, %v1160
        %v1162 = vpop.f32.mrf.mxu0
        %v1163 = vpop.f32.mrf.mxu0
        %v1164 = vadd.f32 %v1076, %v1163
        %v1165 = vpop.f32.mrf.mxu0
        %1166 = vmatprep.mubr.bf16.mxu0 0
        %1167 = vmatmul.mubr.bf16.gmra.mxu0 %v1054
        %v1168 = vpop.f32.mrf.mxu0
        %v1169 = vadd.f32 %v1076, %v1168
        %v1170 = vpop.f32.mrf.mxu0
        %v1171 = vpop.f32.mrf.mxu0
        %v1172 = vadd.f32 %v1076, %v1171
        %v1173 = vpop.f32.mrf.mxu0
        %1174 = vdwg.mxu0
        %1175 = vmax.xlane.f32.xlu0 %v1161
        %v1176 = vpop.xlane.xlu0 %1175
        %1177 = vmax.xlane.f32.xlu0 %v1164
        %v1178 = vpop.xlane.xlu0 %1177
        %1179 = vmax.xlane.f32.xlu0 %v1169
        %v1180 = vpop.xlane.xlu0 %1179
        %1181 = vmax.xlane.f32.xlu0 %v1172
        %v1182 = vpop.xlane.xlu0 %1181
        %v1183 = vsub.f32 %v1161, %v1176
        %v1184 = vsub.f32 %v1164, %v1178
        %v1185 = vsub.f32 %v1169, %v1180
        %v1186 = vsub.f32 %v1172, %v1182
        %v1187 = vmul.f32 %v1183, 1.442695
        %v1188 = vpow.pop %v1187
        %v1189 = vmul.f32 %v1184, 1.442695
        %v1190 = vpow.pop %v1189
        %v1191 = vmul.f32 %v1185, 1.442695
        %v1192 = vpow.pop %v1191
        %v1193 = vmul.f32 %v1186, 1.442695
        %v1194 = vpow.pop %v1193
        %1195 = vadd.xlane.f32.xlu0 %v1188
        %v1196 = vpop.xlane.xlu0 %1195
        %1197 = vadd.xlane.f32.xlu0 %v1190
        %v1198 = vpop.xlane.xlu0 %1197
        %1199 = vadd.xlane.f32.xlu0 %v1192
        %v1200 = vpop.xlane.xlu0 %1199
        %1201 = vadd.xlane.f32.xlu0 %v1194
        %v1202 = vpop.xlane.xlu0 %1201
        %v1203 = vrcp.pop %v1196
        %v1204 = vrcp.pop %v1198
        %v1205 = vrcp.pop %v1200
        %v1206 = vrcp.pop %v1202
        %v1207 = vmul.f32 %v1188, %v1203
        %v1208 = vmul.f32 %v1190, %v1204
        %v1209 = vmul.f32 %v1192, %v1205
        %v1210 = vmul.f32 %v1194, %v1206
        %1211 = vst [vmem:[%s507] sm:$0xff] %v1207
        %1212 = vst [vmem:[%s507 + $0x8] sm:$0xff] %v1208
        %1213 = vst [vmem:[%s507 + $0x10] sm:$0xff] %v1209
        %1214 = vst [vmem:[%s507 + $0x18] sm:$0xff] %v1210
        %s1215 = sand.u32 %s265, 1
        %s1216 = scalar_lea.sflag [#allocation4], %s1215
        %s1217 = sand.u32 %s265, 1
        %s1218 = smul.addr %s1217, 32
        %s1219 = scalar_lea.vmem [#allocation13], %s1218
        %s1220 = sand.u32 %s291, 1
        %s1221 = scalar_lea.sflag [#allocation15], %s1220
        %s1222 = sand.u32 %s291, 1
        %s1223 = smul.addr %s1222, 64
        %s1224 = scalar_lea.vmem [#allocation14], %s1223
        // Predicated region
        $region85: #{tpu_custom_call.1} parent=59 // pred_check
          %p1225 = pneg %p275
        $region86: #{tpu_custom_call.1} parent=59 // pred_check_branch
          %1227 = sbr.rel (%p1225) target = $region88
        $region87: #{tpu_custom_call.1} parent=59 // pred_region
          %s1228 = smul.u32 4, %s37
          %s1230 = ssub.s32 512, 512
          %1231 = vsyncadd %s1216, %s1230
          %s1232 = smul.addr %s1228, 128
          %s1233 = scalar_lea.hbm %s10, %s1232
          %s1234 = sshll.u32 %s1219, 4
          %s1235 = int_to_ptr.vmem [resolvable:$true] %s1234
          %1240 = dma.vmem_to_hbm [thread:$0]  %s1235, 512, %s1233, %s1216, 128, 128, 8
        $region88: #{tpu_custom_call.1} parent=59 // pred_fallthru
          _
        // Predicated region
        $region89: #{tpu_custom_call.1} parent=59 // pred_check
          %p1241 = pneg %p301
        $region90: #{tpu_custom_call.1} parent=59 // pred_check_branch
          %1243 = sbr.rel (%p1241) target = $region92
        $region91: #{tpu_custom_call.1} parent=59 // pred_region
          %s1244 = smul.u32 4, %s37
          %s1246 = ssub.s32 1024, 1024
          %1247 = vsyncadd %s1221, %s1246
          %s1248 = smul.addr %s1244, 2
          %s1249 = smul.addr %s1248, 128
          %s1250 = scalar_lea.hbm %s11, %s1249
          %s1251 = sshll.u32 %s1224, 4
          %s1252 = int_to_ptr.vmem [resolvable:$true] %s1251
          %1257 = dma.vmem_to_hbm [thread:$0]  %s1252, 1024, %s1250, %s1221, 256, 256, 16
        $region92: #{tpu_custom_call.1} parent=59 // pred_fallthru
          _
      $region60: #{tpu_custom_call.1} parent=5 // pred_fallthru
        _
      %p1258 = scmp.le.s32.totalorder 2, %s32
      // Predicated region
      $region93: #{tpu_custom_call.1} parent=5 // pred_check
        %p1259 = pneg %p1258
      $region94: #{tpu_custom_call.1} parent=5 // pred_check_branch
        %1261 = sbr.rel (%p1259) target = $region96
      $region95: #{tpu_custom_call.1} parent=5 // pred_region
        %s1262 = ssub.s32 %s32, 2
        // Predicated region
        $region97: #{tpu_custom_call.1} parent=95 // pred_check
          %p1263 = pneg %p281
        $region98: #{tpu_custom_call.1} parent=95 // pred_check_branch
          %1265 = sbr.rel (%p1263) target = $region100
        $region99: #{tpu_custom_call.1} parent=95 // pred_region
          %s1266 = sand.u32 %s266, 1
          %s1267 = scalar_lea.sflag [#allocation4], %s1266
          %s1268 = sand.u32 %s266, 1
          %s1269 = smul.addr %s1268, 32
          %s1270 = scalar_lea.vmem [#allocation13], %s1269
          %1271 = dma.done %s1267, 512
        $region100: #{tpu_custom_call.1} parent=95 // pred_fallthru
          _
        // Predicated region
        $region101: #{tpu_custom_call.1} parent=95 // pred_check
          %p1272 = pneg %p307
        $region102: #{tpu_custom_call.1} parent=95 // pred_check_branch
          %1274 = sbr.rel (%p1272) target = $region104
        $region103: #{tpu_custom_call.1} parent=95 // pred_region
          %s1275 = sand.u32 %s292, 1
          %s1276 = scalar_lea.sflag [#allocation15], %s1275
          %s1277 = sand.u32 %s292, 1
          %s1278 = smul.addr %s1277, 64
          %s1279 = scalar_lea.vmem [#allocation14], %s1278
          %1280 = dma.done %s1276, 1024
        $region104: #{tpu_custom_call.1} parent=95 // pred_fallthru
          _
      $region96: #{tpu_custom_call.1} parent=5 // pred_fallthru
        _
    $region6: #{tpu_custom_call.1} parent=1 // loop_footer
      %s36 = sadd.s32 1, %s32
    $region7: #{tpu_custom_call.1} parent=1 // loop_footer_branch
      %31 = sbr.rel target = $region3
    $region8: #{tpu_custom_call.1} parent=1 // loop_exit
      _
    %1281 = vsyncpa [#allocation3], 1
    %s1282 = scalar_lea.sflag [#allocation3], 1
    %1283 = vsyncpa %s1282, 1
    %1284 = vsyncpa [#allocation6], 1
    %s1285 = scalar_lea.sflag [#allocation6], 1
    %1286 = vsyncpa %s1285, 1
    %1287 = vsyncpa [#allocation9], 1
    %1288 = vsyncpa [#allocation12], 1
    %1289 = vsyncpa [#allocation4], 1
    %s1290 = scalar_lea.sflag [#allocation4], 1
    %1291 = vsyncpa %s1290, 1
    %1292 = vsyncpa [#allocation15], 1
    %s1293 = scalar_lea.sflag [#allocation15], 1
    %1294 = vsyncpa %s1293, 1

</llo_original>
